<compile_context>
chip_gen: v7x
topology: tpu7x:2x2x1
jax: 0.10.0
libtpu: 0.0.40
codegen_flags: <defaults>
</compile_context>

<pallas_src>
import jax
import jax.numpy as jnp
from jax.experimental import pallas as pl
from jax.experimental.pallas import tpu as pltpu


def nnea_kernel(r_ref, w_ref, w1_ref, b1_ref, w2_ref, b2_ref, out_ref):
    # es = R @ W_eff'  (out-of-set rank-1 correction already folded into W_eff')
    es = jnp.dot(r_ref[...], w_ref[...],
                 preferred_element_type=jnp.float32)                 # [tb, K]
    # classifier: Linear -> ReLU -> Linear
    h = jnp.maximum(
        jnp.dot(es, w1_ref[...], preferred_element_type=jnp.float32)
        + b1_ref[...], 0.0)                                          # [tb, H]
    logits = jnp.dot(h, w2_ref[...],
                     preferred_element_type=jnp.float32) + b2_ref[...]  # [tb, Cp]
    # log_softmax over the lane-dense padded class dim (pad cols carry -1e30 bias)
    m = jnp.max(logits, axis=1, keepdims=True)
    z = logits - m
    lse = jnp.log(jnp.sum(jnp.exp(z), axis=1, keepdims=True))
    out_ref[...] = (z - lse).astype(out_ref.dtype)


def nnea_forward(R, S, Wset, W1, b1, W2, b2, *, tb=128):
    # TODO(synk): S (sorted order) unused — see module-level note.
    del S
    B, G = R.shape
    K = Wset.shape[0]
    H = W1.shape[1]
    C = W2.shape[1]
    Cp = ((C + 127) // 128) * 128                    # lane-dense padded class dim

    tb = min(tb, B)
    assert B % tb == 0, "batch must tile evenly"

    # ---- batch-independent precompute (hoisted off the hot path) ----
    ind = jax.nn.sigmoid(Wset.astype(jnp.float32))                   # [K, G]
    in_sum = jnp.sum(ind, axis=1)                                    # [K]
    out_sum = jnp.float32(G) - in_sum                                # [K]
    scale = 1.0 / in_sum + 1.0 / out_sum                             # [K]
    offs = 1.0 / out_sum                                             # [K]
    # W_eff'[g,k]: normalized, transposed, and with the rank-1 correction folded in
    w_eff = (ind * scale[:, None]).T - offs[None, :]                 # [G, K]

    b1r = b1.reshape(1, H).astype(jnp.float32)
    w2p = jnp.zeros((H, Cp), jnp.float32).at[:, :C].set(W2.astype(jnp.float32))
    b2p = jnp.full((1, Cp), -1e30, jnp.float32).at[:, :C].set(
        b2.reshape(1, C).astype(jnp.float32))

    grid = (B // tb,)

    grid_spec = pltpu.PrefetchScalarGridSpec(
        num_scalar_prefetch=0,
        grid=grid,
        in_specs=[
            pl.BlockSpec((tb, G), lambda bi: (bi, 0)),    # R        (streamed)
            pl.BlockSpec((G, K), lambda bi: (0, 0)),      # W_eff'   (resident)
            pl.BlockSpec((K, H), lambda bi: (0, 0)),      # W1       (resident)
            pl.BlockSpec((1, H), lambda bi: (0, 0)),      # b1
            pl.BlockSpec((H, Cp), lambda bi: (0, 0)),     # W2 (padded classes)
            pl.BlockSpec((1, Cp), lambda bi: (0, 0)),     # b2 (padded classes)
        ],
        out_specs=pl.BlockSpec((tb, Cp), lambda bi: (bi, 0)),
    )

    out_pad = pl.pallas_call(
        nnea_kernel,
        out_shape=jax.ShapeDtypeStruct((B, Cp), jnp.float32),
        grid_spec=grid_spec,
        compiler_params=pltpu.CompilerParams(
            dimension_semantics=("parallel",),
            vmem_limit_bytes=32 * 1024 * 1024,
        ),
    )(R.astype(jnp.float32), w_eff,
      W1.astype(jnp.float32), b1r, w2p, b2p)

    return out_pad[:, :C]


def nnea_reference(R, S, Wset, W1, b1, W2, b2):
    hp = jax.lax.Precision.HIGHEST
    ind = jax.nn.sigmoid(Wset)
    es = (jnp.dot(R, ind.T, precision=hp) / jnp.sum(ind, axis=1)
          - jnp.dot(R, 1.0 - ind.T, precision=hp) / jnp.sum(1.0 - ind, axis=1))
    h = jnp.maximum(jnp.dot(es, W1, precision=hp) + b1, 0.0)
    logits = jnp.dot(h, W2, precision=hp) + b2
    return jax.nn.log_softmax(logits, axis=1)


if __name__ == "__main__":
    # batch=256 (2 parallel batch tiles), num_genes=512, num_sets=256,
    # hidden=128, classes=8
    B, G, K, H, C = 256, 512, 256, 128, 8

    key = jax.random.PRNGKey(0)
    k_r, k_s, k_w, k_w1, k_b1, k_w2, k_b2 = jax.random.split(key, 7)

    # R: per-sample ranked expression (normalized ranks in [0,1]); S: sorted order.
    R = jax.random.uniform(k_r, (B, G), dtype=jnp.float32)
    S = jax.random.uniform(k_s, (B, G), dtype=jnp.float32)

    # deterministic synthetic parameters (geneset membership logits + classifier)
    Wset = 0.1 * jax.random.normal(k_w, (K, G), dtype=jnp.float32)
    W1 = 0.05 * jax.random.normal(k_w1, (K, H), dtype=jnp.float32)
    b1 = 0.01 * jax.random.normal(k_b1, (1, H), dtype=jnp.float32)
    W2 = 0.05 * jax.random.normal(k_w2, (H, C), dtype=jnp.float32)
    b2 = 0.01 * jax.random.normal(k_b2, (1, C), dtype=jnp.float32)

    out = jax.block_until_ready(nnea_forward(R, S, Wset, W1, b1, W2, b2))

    ref = nnea_reference(R, S, Wset, W1, b1, W2, b2)
    assert out.shape == (B, C)
    assert jnp.allclose(out, ref, atol=1e-4, rtol=1e-4), "mismatch vs reference"

    print("KERNEL_OK")
</pallas_src>

<mosaic_0001>
module attributes {stable_mosaic.version = 11 : i64} {
  func.func @nnea_kernel(%arg0: i32, %arg1: memref<128x512xf32, #tpu.memory_space<vmem>>, %arg2: memref<512x256xf32, #tpu.memory_space<vmem>>, %arg3: memref<256x128xf32, #tpu.memory_space<vmem>>, %arg4: memref<1x128xf32, #tpu.memory_space<vmem>>, %arg5: memref<128x128xf32, #tpu.memory_space<vmem>>, %arg6: memref<1x128xf32, #tpu.memory_space<vmem>>, %arg7: memref<128x128xf32, #tpu.memory_space<vmem>>) attributes {dimension_semantics = [#tpu.dimension_semantics<parallel>], iteration_bounds = array<i64: 2>, scalar_prefetch = 0 : i64, scratch_operands = 0 : i64, tpu.core_type = #tpu.core_type<tc>, window_params = [{transform_indices = @transform_0, window_bounds = array<i64: 128, 512>}, {pipeline_mode = #tpu.pipeline_mode<synchronous>, transform_indices = @transform_1, window_bounds = array<i64: 512, 256>}, {pipeline_mode = #tpu.pipeline_mode<synchronous>, transform_indices = @transform_2, window_bounds = array<i64: 256, 128>}, {pipeline_mode = #tpu.pipeline_mode<synchronous>, transform_indices = @transform_3, window_bounds = array<i64: 1, 128>}, {pipeline_mode = #tpu.pipeline_mode<synchronous>, transform_indices = @transform_4, window_bounds = array<i64: 128, 128>}, {pipeline_mode = #tpu.pipeline_mode<synchronous>, transform_indices = @transform_5, window_bounds = array<i64: 1, 128>}, {transform_indices = @transform_6, window_bounds = array<i64: 128, 128>}]} {
    %c0 = arith.constant 0 : index
    %c0_0 = arith.constant 0 : index
    %0 = vector.load %arg1[%c0, %c0_0] : memref<128x512xf32, #tpu.memory_space<vmem>>, vector<128x512xf32>
    %c0_1 = arith.constant 0 : index
    %c0_2 = arith.constant 0 : index
    %1 = vector.load %arg2[%c0_1, %c0_2] : memref<512x256xf32, #tpu.memory_space<vmem>>, vector<512x256xf32>
    %cst = arith.constant dense<0.000000e+00> : vector<128x256xf32>
    %2 = tpu.matmul %0, %1, %cst {dimension_numbers = #tpu.dot_dimension_numbers<[1], [0], [0], [1], [0, 0, 1, 1], [], []>} : vector<128x512xf32>, vector<512x256xf32>, vector<128x256xf32> -> vector<128x256xf32>
    %c0_3 = arith.constant 0 : index
    %c0_4 = arith.constant 0 : index
    %3 = vector.load %arg3[%c0_3, %c0_4] : memref<256x128xf32, #tpu.memory_space<vmem>>, vector<256x128xf32>
    %cst_5 = arith.constant dense<0.000000e+00> : vector<128x128xf32>
    %4 = tpu.matmul %2, %3, %cst_5 {dimension_numbers = #tpu.dot_dimension_numbers<[1], [0], [0], [1], [0, 0, 1, 1], [], []>} : vector<128x256xf32>, vector<256x128xf32>, vector<128x128xf32> -> vector<128x128xf32>
    %c0_6 = arith.constant 0 : index
    %c0_7 = arith.constant 0 : index
    %5 = vector.load %arg4[%c0_6, %c0_7] : memref<1x128xf32, #tpu.memory_space<vmem>>, vector<1x128xf32>
    %6 = vector.broadcast %5 : vector<1x128xf32> to vector<128x128xf32>
    %7 = arith.addf %4, %6 : vector<128x128xf32>
    %cst_8 = arith.constant 0.000000e+00 : f32
    %8 = vector.broadcast %cst_8 : f32 to vector<128x128xf32>
    %9 = arith.maximumf %7, %8 : vector<128x128xf32>
    %c0_9 = arith.constant 0 : index
    %c0_10 = arith.constant 0 : index
    %10 = vector.load %arg5[%c0_9, %c0_10] : memref<128x128xf32, #tpu.memory_space<vmem>>, vector<128x128xf32>
    %cst_11 = arith.constant dense<0.000000e+00> : vector<128x128xf32>
    %11 = tpu.matmul %9, %10, %cst_11 {dimension_numbers = #tpu.dot_dimension_numbers<[1], [0], [0], [1], [0, 0, 1, 1], [], []>} : vector<128x128xf32>, vector<128x128xf32>, vector<128x128xf32> -> vector<128x128xf32>
    %c0_12 = arith.constant 0 : index
    %c0_13 = arith.constant 0 : index
    %12 = vector.load %arg6[%c0_12, %c0_13] : memref<1x128xf32, #tpu.memory_space<vmem>>, vector<1x128xf32>
    %13 = vector.broadcast %12 : vector<1x128xf32> to vector<128x128xf32>
    %14 = arith.addf %11, %13 : vector<128x128xf32>
    %cst_14 = arith.constant dense<0xFF800000> : vector<128xf32>
    %15 = vector.multi_reduction <maximumf>, %14, %cst_14 [1] : vector<128x128xf32> to vector<128xf32>
    %16 = vector.shape_cast %15 : vector<128xf32> to vector<128x1xf32>
    %17 = vector.broadcast %16 : vector<128x1xf32> to vector<128x128xf32>
    %18 = arith.subf %14, %17 : vector<128x128xf32>
    %19 = math.exp %18 : vector<128x128xf32>
    %cst_15 = arith.constant dense<0.000000e+00> : vector<128xf32>
    %20 = vector.multi_reduction <add>, %19, %cst_15 [1] : vector<128x128xf32> to vector<128xf32>
    %21 = vector.shape_cast %20 : vector<128xf32> to vector<128x1xf32>
    %22 = math.log %21 : vector<128x1xf32>
    %23 = vector.broadcast %22 : vector<128x1xf32> to vector<128x128xf32>
    %24 = arith.subf %18, %23 : vector<128x128xf32>
    %c0_16 = arith.constant 0 : index
    %c0_17 = arith.constant 0 : index
    %25 = vector.load %arg7[%c0_16, %c0_17] : memref<128x128xf32, #tpu.memory_space<vmem>>, vector<128x128xf32>
    tpu.vector_store %arg7[%c0_16, %c0_17], %24 {strides = array<i32>} : memref<128x128xf32, #tpu.memory_space<vmem>>, vector<128x128xf32>,
    return
  }
  func.func @transform_0(%arg0: i32) -> (i32, i32) {
    %c0_i32 = arith.constant 0 : i32
    %c0_i32_0 = arith.constant 0 : i32
    return %arg0, %c0_i32 : i32, i32
  }
  func.func @transform_1(%arg0: i32) -> (i32, i32) {
    %c0_i32 = arith.constant 0 : i32
    %c0_i32_0 = arith.constant 0 : i32
    %c0_i32_1 = arith.constant 0 : i32
    return %c0_i32, %c0_i32_0 : i32, i32
  }
  func.func @transform_2(%arg0: i32) -> (i32, i32) {
    %c0_i32 = arith.constant 0 : i32
    %c0_i32_0 = arith.constant 0 : i32
    %c0_i32_1 = arith.constant 0 : i32
    return %c0_i32, %c0_i32_0 : i32, i32
  }
  func.func @transform_3(%arg0: i32) -> (i32, i32) {
    %c0_i32 = arith.constant 0 : i32
    %c0_i32_0 = arith.constant 0 : i32
    %c0_i32_1 = arith.constant 0 : i32
    return %c0_i32, %c0_i32_0 : i32, i32
  }
  func.func @transform_4(%arg0: i32) -> (i32, i32) {
    %c0_i32 = arith.constant 0 : i32
    %c0_i32_0 = arith.constant 0 : i32
    %c0_i32_1 = arith.constant 0 : i32
    return %c0_i32, %c0_i32_0 : i32, i32
  }
  func.func @transform_5(%arg0: i32) -> (i32, i32) {
    %c0_i32 = arith.constant 0 : i32
    %c0_i32_0 = arith.constant 0 : i32
    %c0_i32_1 = arith.constant 0 : i32
    return %c0_i32, %c0_i32_0 : i32, i32
  }
  func.func @transform_6(%arg0: i32) -> (i32, i32) {
    %c0_i32 = arith.constant 0 : i32
    %c0_i32_0 = arith.constant 0 : i32
    return %arg0, %c0_i32 : i32, i32
  }
}

</mosaic_0001>

<llo_original>
// kernel: tpu_custom_call.1
$region0: #{tpu_custom_call.1}
  #allocation0 [shape = 'u32[]', space=smem, size = 0x4, offset = 0x4, fixed_abs, tag = 'smem constant byte address 0x4 - core index']
  #allocation1 [shape = 'u32[144,128]{1,0:T(1,128)}', space=vmem, size = 0x12000, scoped, tag = 'internal scratch']
  %s0 = inlined_call_operand.hbm [shape: f32[256,512], index: 0, kind: input, shape index: {}]
  %s1 = inlined_call_operand.hbm [shape: f32[512,256], index: 1, kind: input, shape index: {}]
  %s2 = inlined_call_operand.hbm [shape: f32[256,128], index: 2, kind: input, shape index: {}]
  %s3 = inlined_call_operand.vmem [shape: f32[1,128], index: 3, kind: input, shape index: {}]
  %s4 = inlined_call_operand.hbm [shape: f32[128,128], index: 4, kind: input, shape index: {}]
  %s5 = inlined_call_operand.vmem [shape: f32[1,128], index: 5, kind: input, shape index: {}]
  %s6 = inlined_call_operand.hbm [shape: f32[256,128], index: 6, kind: output, shape index: {}]
  %s7 = sld [smem:[#allocation0]]
  $region73: #{tpu_custom_call.1} parent=0
    _
  %s9 = ssub.s32 1, %s7
  %s10 = scalar_select 0, %s9, %s7
  $region1: #{tpu_custom_call.1} parent=0
    #allocation2 [shape = 'u8[524288]{0}', space=vmem, size = 0x80000, scoped, tag = 'input window, operand 0']
    #allocation3 [shape = 's32[2]{0}', space=sflag, size = 0x8, scoped, tag = 'scoped memory for tpu_custom_call.1']
    #allocation4 [shape = 's32[2]{0}', space=sflag, size = 0x8, scoped, tag = 'scoped memory for tpu_custom_call.1']
    #allocation5 [shape = 'u8[524288]{0}', space=vmem, size = 0x80000, scoped, tag = 'input window, operand 1, single buffered']
    #allocation6 [shape = 's32[1]{0}', space=sflag, size = 0x4, scoped, tag = 'scoped memory for tpu_custom_call.1']
    #allocation7 [shape = 'u8[131072]{0}', space=vmem, size = 0x20000, scoped, tag = 'input window, operand 2, single buffered']
    #allocation8 [shape = 'u8[65536]{0}', space=vmem, size = 0x10000, scoped, tag = 'input window, operand 4, single buffered']
    #allocation9 [shape = 's32[1]{0}', space=sflag, size = 0x4, scoped, tag = 'scoped memory for tpu_custom_call.1']
    #allocation10 [shape = 'u8[131072]{0}', space=vmem, size = 0x20000, scoped, tag = 'output window, operand 0']
    %11 = vsyncpa [#allocation3], 0
    %s12 = scalar_lea.sflag [#allocation3], 1
    %13 = vsyncpa %s12, 0
    %14 = vsyncpa [#allocation6], 0
    %15 = vsyncpa [#allocation9], 0
    %16 = vsyncpa [#allocation4], 0
    %s17 = scalar_lea.sflag [#allocation4], 1
    %18 = vsyncpa %s17, 0
    loop: start=0, step=1, limit=4
    $region2: #{tpu_custom_call.1} parent=1 // loop_pre_header
      _
    $region3: #{tpu_custom_call.1} parent=1 // loop_header
      %s20 = sphi 0, %s24
      %p21 = scmp.ge.s32.totalorder %s20, 4
      %s30 = sphi 0, %s32
      %s33 = sphi 0, %s30
      %s34 = sphi 0, %s33
      %s50 = sphi 0, %s34
      %s54 = sphi 0, %s54
      %s56 = sphi 0, %s54
      %s57 = sphi 0, %s56
      %s71 = sphi 0, %s57
      %s75 = sphi 0, %s75
      %s77 = sphi 0, %s75
      %s78 = sphi 0, %s77
      %s92 = sphi 0, %s78
      %s96 = sphi 0, %s96
      %s98 = sphi 0, %s96
      %s99 = sphi 0, %s98
      %s113 = sphi 0, %s99
      %s117 = sphi 0, %s117
      %s119 = sphi 0, %s117
      %s120 = sphi 0, %s119
      %s134 = sphi 0, %s120
      %s138 = sphi 0, %s138
      %s140 = sphi 0, %s138
      %s141 = sphi 0, %s140
      %s155 = sphi 0, %s141
      %s161 = sphi 0, %s163
      %s164 = sphi 0, %s161
      %s165 = sphi 0, %s164
      %s181 = sphi 0, %s165
    $region4: #{tpu_custom_call.1} parent=1 // loop_header_branch
      %23 = sbr.rel (%p21) target = $region8
    $region5: #{tpu_custom_call.1} parent=1 // loop_body
      %s25 = ssub.s32 %s20, 1
      %s26 = ssub.s32 %s20, 2
      %s27 = sadd.s32 %s20, 1
      %s28 = ssub.s32 %s20, %s27
      %p29 = scmp.eq.s32.totalorder %s28, 0
      %s31 = sadd.s32 %s30, 1
      %s32 = scalar_select %p29, %s30, %s31
      %p35 = pneg %p29
      %p36 = scmp.eq.s32.totalorder %s20, 1
      %p37 = por %p35, %p36
      %p38 = scmp.ne.s32.totalorder %s30, %s33
      %p39 = scmp.eq.s32.totalorder %s20, 0
      %p40 = por %p38, %p39
      %p41 = scmp.ne.s32.totalorder %s30, %s33
      %p42 = scmp.eq.s32.totalorder %s25, 1
      %p43 = por %p41, %p42
      %p44 = scmp.ne.s32.totalorder %s33, %s34
      %p45 = scmp.eq.s32.totalorder %s25, 0
      %p46 = por %p44, %p45
      %p47 = scmp.ne.s32.totalorder %s33, %s34
      %p48 = scmp.eq.s32.totalorder %s26, 1
      %p49 = por %p47, %p48
      %p51 = scmp.ne.s32.totalorder %s34, %s50
      %p52 = scmp.eq.s32.totalorder %s26, 0
      %p53 = por %p51, %p52
      %s55 = sadd.s32 %s54, 1
      %p58 = scmp.eq.s32.totalorder %s20, 1
      %p59 = scmp.ne.s32.totalorder %s54, %s56
      %p60 = scmp.eq.s32.totalorder %s20, 0
      %p61 = por %p59, %p60
      %p62 = scmp.ne.s32.totalorder %s54, %s56
      %p63 = scmp.eq.s32.totalorder %s25, 1
      %p64 = por %p62, %p63
      %p65 = scmp.ne.s32.totalorder %s56, %s57
      %p66 = scmp.eq.s32.totalorder %s25, 0
      %p67 = por %p65, %p66
      %p68 = scmp.ne.s32.totalorder %s56, %s57
      %p69 = scmp.eq.s32.totalorder %s26, 1
      %p70 = por %p68, %p69
      %p72 = scmp.ne.s32.totalorder %s57, %s71
      %p73 = scmp.eq.s32.totalorder %s26, 0
      %p74 = por %p72, %p73
      %s76 = sadd.s32 %s75, 1
      %p79 = scmp.eq.s32.totalorder %s20, 1
      %p80 = scmp.ne.s32.totalorder %s75, %s77
      %p81 = scmp.eq.s32.totalorder %s20, 0
      %p82 = por %p80, %p81
      %p83 = scmp.ne.s32.totalorder %s75, %s77
      %p84 = scmp.eq.s32.totalorder %s25, 1
      %p85 = por %p83, %p84
      %p86 = scmp.ne.s32.totalorder %s77, %s78
      %p87 = scmp.eq.s32.totalorder %s25, 0
      %p88 = por %p86, %p87
      %p89 = scmp.ne.s32.totalorder %s77, %s78
      %p90 = scmp.eq.s32.totalorder %s26, 1
      %p91 = por %p89, %p90
      %p93 = scmp.ne.s32.totalorder %s78, %s92
      %p94 = scmp.eq.s32.totalorder %s26, 0
      %p95 = por %p93, %p94
      %s97 = sadd.s32 %s96, 1
      %p100 = scmp.eq.s32.totalorder %s20, 1
      %p101 = scmp.ne.s32.totalorder %s96, %s98
      %p102 = scmp.eq.s32.totalorder %s20, 0
      %p103 = por %p101, %p102
      %p104 = scmp.ne.s32.totalorder %s96, %s98
      %p105 = scmp.eq.s32.totalorder %s25, 1
      %p106 = por %p104, %p105
      %p107 = scmp.ne.s32.totalorder %s98, %s99
      %p108 = scmp.eq.s32.totalorder %s25, 0
      %p109 = por %p107, %p108
      %p110 = scmp.ne.s32.totalorder %s98, %s99
      %p111 = scmp.eq.s32.totalorder %s26, 1
      %p112 = por %p110, %p111
      %p114 = scmp.ne.s32.totalorder %s99, %s113
      %p115 = scmp.eq.s32.totalorder %s26, 0
      %p116 = por %p114, %p115
      %s118 = sadd.s32 %s117, 1
      %p121 = scmp.eq.s32.totalorder %s20, 1
      %p122 = scmp.ne.s32.totalorder %s117, %s119
      %p123 = scmp.eq.s32.totalorder %s20, 0
      %p124 = por %p122, %p123
      %p125 = scmp.ne.s32.totalorder %s117, %s119
      %p126 = scmp.eq.s32.totalorder %s25, 1
      %p127 = por %p125, %p126
      %p128 = scmp.ne.s32.totalorder %s119, %s120
      %p129 = scmp.eq.s32.totalorder %s25, 0
      %p130 = por %p128, %p129
      %p131 = scmp.ne.s32.totalorder %s119, %s120
      %p132 = scmp.eq.s32.totalorder %s26, 1
      %p133 = por %p131, %p132
      %p135 = scmp.ne.s32.totalorder %s120, %s134
      %p136 = scmp.eq.s32.totalorder %s26, 0
      %p137 = por %p135, %p136
      %s139 = sadd.s32 %s138, 1
      %p142 = scmp.eq.s32.totalorder %s20, 1
      %p143 = scmp.ne.s32.totalorder %s138, %s140
      %p144 = scmp.eq.s32.totalorder %s20, 0
      %p145 = por %p143, %p144
      %p146 = scmp.ne.s32.totalorder %s138, %s140
      %p147 = scmp.eq.s32.totalorder %s25, 1
      %p148 = por %p146, %p147
      %p149 = scmp.ne.s32.totalorder %s140, %s141
      %p150 = scmp.eq.s32.totalorder %s25, 0
      %p151 = por %p149, %p150
      %p152 = scmp.ne.s32.totalorder %s140, %s141
      %p153 = scmp.eq.s32.totalorder %s26, 1
      %p154 = por %p152, %p153
      %p156 = scmp.ne.s32.totalorder %s141, %s155
      %p157 = scmp.eq.s32.totalorder %s26, 0
      %p158 = por %p156, %p157
      %s159 = ssub.s32 %s20, %s27
      %p160 = scmp.eq.s32.totalorder %s159, 0
      %s162 = sadd.s32 %s161, 1
      %s163 = scalar_select %p160, %s161, %s162
      %p166 = pneg %p160
      %p167 = scmp.eq.s32.totalorder %s20, 1
      %p168 = por %p166, %p167
      %p169 = scmp.ne.s32.totalorder %s161, %s164
      %p170 = scmp.eq.s32.totalorder %s20, 0
      %p171 = por %p169, %p170
      %p172 = scmp.ne.s32.totalorder %s161, %s164
      %p173 = scmp.eq.s32.totalorder %s25, 1
      %p174 = por %p172, %p173
      %p175 = scmp.ne.s32.totalorder %s164, %s165
      %p176 = scmp.eq.s32.totalorder %s25, 0
      %p177 = por %p175, %p176
      %p178 = scmp.ne.s32.totalorder %s164, %s165
      %p179 = scmp.eq.s32.totalorder %s26, 1
      %p180 = por %p178, %p179
      %p182 = scmp.ne.s32.totalorder %s165, %s181
      %p183 = scmp.eq.s32.totalorder %s26, 0
      %p184 = por %p182, %p183
      %p185 = scmp.le.s32.totalorder 1, %s20
      %p186 = scmp.lt.s32.totalorder %s20, 3
      %p187 = pnand %p185, %p186
      %p188 = pneg %p187
      // Predicated region
      $region9: #{tpu_custom_call.1} parent=5 // pred_check
        _
      $region10: #{tpu_custom_call.1} parent=5 // pred_check_branch
        %190 = sbr.rel (%p187) target = $region12
      $region11: #{tpu_custom_call.1} parent=5 // pred_region
        %s191 = ssub.s32 %s20, 1
        // Predicated region
        $region13: #{tpu_custom_call.1} parent=11 // pred_check
          %p192 = pneg %p67
        $region14: #{tpu_custom_call.1} parent=11 // pred_check_branch
          %194 = sbr.rel (%p192) target = $region16
        $region15: #{tpu_custom_call.1} parent=11 // pred_region
          %s196 = ssub.s32 16384, 16384
          %197 = vsyncadd [#allocation6], %s196
          %s198 = sshll.u32 [#allocation5], 4
          %s199 = int_to_ptr.vmem [resolvable:$true] %s198
          %204 = dma.hbm_to_vmem [thread:$0]  %s1, 16384, %s199, [#allocation6], 256, 256, 16
        $region16: #{tpu_custom_call.1} parent=11 // pred_fallthru
          _
        // Predicated region
        $region17: #{tpu_custom_call.1} parent=11 // pred_check
          %p205 = pneg %p88
        $region18: #{tpu_custom_call.1} parent=11 // pred_check_branch
          %207 = sbr.rel (%p205) target = $region20
        $region19: #{tpu_custom_call.1} parent=11 // pred_region
          %s209 = ssub.s32 4096, 4096
          %210 = vsyncadd [#allocation6], %s209
          %s211 = sshll.u32 [#allocation7], 4
          %s212 = int_to_ptr.vmem [resolvable:$true] %s211
          %217 = dma.hbm_to_vmem [thread:$0]  %s2, 4096, %s212, [#allocation6], 128, 128, 8
        $region20: #{tpu_custom_call.1} parent=11 // pred_fallthru
          _
        // Predicated region
        $region21: #{tpu_custom_call.1} parent=11 // pred_check
          %p218 = pneg %p109
        $region22: #{tpu_custom_call.1} parent=11 // pred_check_branch
          %220 = sbr.rel (%p218) target = $region24
        $region23: #{tpu_custom_call.1} parent=11 // pred_region
          _
        $region24: #{tpu_custom_call.1} parent=11 // pred_fallthru
          _
        // Predicated region
        $region25: #{tpu_custom_call.1} parent=11 // pred_check
          %p221 = pneg %p130
        $region26: #{tpu_custom_call.1} parent=11 // pred_check_branch
          %223 = sbr.rel (%p221) target = $region28
        $region27: #{tpu_custom_call.1} parent=11 // pred_region
          %s225 = ssub.s32 2048, 2048
          %226 = vsyncadd [#allocation9], %s225
          %s227 = sshll.u32 [#allocation8], 4
          %s228 = int_to_ptr.vmem [resolvable:$true] %s227
          %233 = dma.hbm_to_vmem [thread:$0]  %s4, 2048, %s228, [#allocation9], 128, 128, 8
        $region28: #{tpu_custom_call.1} parent=11 // pred_fallthru
          _
        // Predicated region
        $region29: #{tpu_custom_call.1} parent=11 // pred_check
          %p234 = pneg %p151
        $region30: #{tpu_custom_call.1} parent=11 // pred_check_branch
          %236 = sbr.rel (%p234) target = $region32
        $region31: #{tpu_custom_call.1} parent=11 // pred_region
          _
        $region32: #{tpu_custom_call.1} parent=11 // pred_fallthru
          _
      $region12: #{tpu_custom_call.1} parent=5 // pred_fallthru
        _
      %p237 = scmp.lt.s32.totalorder %s20, 2
      // Predicated region
      $region33: #{tpu_custom_call.1} parent=5 // pred_check
        %p238 = pneg %p237
      $region34: #{tpu_custom_call.1} parent=5 // pred_check_branch
        %240 = sbr.rel (%p238) target = $region36
      $region35: #{tpu_custom_call.1} parent=5 // pred_region
        // Predicated region
        $region37: #{tpu_custom_call.1} parent=35 // pred_check
          %p241 = pneg %p40
        $region38: #{tpu_custom_call.1} parent=35 // pred_check_branch
          %243 = sbr.rel (%p241) target = $region40
        $region39: #{tpu_custom_call.1} parent=35 // pred_region
          %s244 = sand.u32 %s30, 1
          %s245 = scalar_lea.sflag [#allocation3], %s244
          %s246 = sand.u32 %s30, 1
          %s247 = smul.addr %s246, 512
          %s248 = scalar_lea.vmem [#allocation2], %s247
          %s249 = smul.u32 16, %s20
          %s251 = ssub.s32 8192, 8192
          %252 = vsyncadd %s245, %s251
          %s253 = smul.addr %s249, 4
          %s254 = smul.addr %s253, 128
          %s255 = scalar_lea.hbm %s0, %s254
          %s256 = sshll.u32 %s248, 4
          %s257 = int_to_ptr.vmem [resolvable:$true] %s256
          %262 = dma.hbm_to_vmem [thread:$0]  %s255, 8192, %s257, %s245, 512, 512, 32
        $region40: #{tpu_custom_call.1} parent=35 // pred_fallthru
          _
      $region36: #{tpu_custom_call.1} parent=5 // pred_fallthru
        _
      %p263 = scmp.le.s32.totalorder 1, %s20
      %p264 = scmp.lt.s32.totalorder %s20, 3
      %p265 = pnand %p263, %p264
      %p266 = pneg %p265
      // Predicated region
      $region41: #{tpu_custom_call.1} parent=5 // pred_check
        _
      $region42: #{tpu_custom_call.1} parent=5 // pred_check_branch
        %268 = sbr.rel (%p265) target = $region44
      $region43: #{tpu_custom_call.1} parent=5 // pred_region
        %s269 = ssub.s32 %s20, 1
        %s270 = sand.u32 %s33, 1
        %s271 = scalar_lea.sflag [#allocation3], %s270
        %s272 = sand.u32 %s33, 1
        %s273 = smul.addr %s272, 512
        %s274 = scalar_lea.vmem [#allocation2], %s273
        // Predicated region
        $region45: #{tpu_custom_call.1} parent=43 // pred_check
          %p275 = pneg %p46
        $region46: #{tpu_custom_call.1} parent=43 // pred_check_branch
          %277 = sbr.rel (%p275) target = $region48
        $region47: #{tpu_custom_call.1} parent=43 // pred_region
          %278 = dma.done %s271, 8192
        $region48: #{tpu_custom_call.1} parent=43 // pred_fallthru
          _
        // Predicated region
        $region49: #{tpu_custom_call.1} parent=43 // pred_check
          %p279 = pneg %p67
        $region50: #{tpu_custom_call.1} parent=43 // pred_check_branch
          %281 = sbr.rel (%p279) target = $region52
        $region51: #{tpu_custom_call.1} parent=43 // pred_region
          %282 = dma.done [#allocation6], 16384
        $region52: #{tpu_custom_call.1} parent=43 // pred_fallthru
          _
        // Predicated region
        $region53: #{tpu_custom_call.1} parent=43 // pred_check
          %p283 = pneg %p88
        $region54: #{tpu_custom_call.1} parent=43 // pred_check_branch
          %285 = sbr.rel (%p283) target = $region56
        $region55: #{tpu_custom_call.1} parent=43 // pred_region
          %286 = dma.done [#allocation6], 4096
        $region56: #{tpu_custom_call.1} parent=43 // pred_fallthru
          _
        // Predicated region
        $region57: #{tpu_custom_call.1} parent=43 // pred_check
          %p287 = pneg %p130
        $region58: #{tpu_custom_call.1} parent=43 // pred_check_branch
          %289 = sbr.rel (%p287) target = $region60
        $region59: #{tpu_custom_call.1} parent=43 // pred_region
          %290 = dma.done [#allocation9], 2048
        $region60: #{tpu_custom_call.1} parent=43 // pred_fallthru
          _
        %s291 = sand.u32 %s33, 1
        %s292 = scalar_lea.sflag [#allocation3], %s291
        %s293 = sand.u32 %s33, 1
        %s294 = smul.addr %s293, 512
        %s295 = scalar_lea.vmem [#allocation2], %s294
        %p296 = pneg %p46
        %p297 = pneg %p43
        %p298 = pneg %p67
        %p299 = pneg %p64
        %p300 = pneg %p88
        %p301 = pneg %p85
        %p302 = pneg %p109
        %p303 = pneg %p106
        %p304 = pneg %p130
        %p305 = pneg %p127
        %p306 = pneg %p151
        %p307 = pneg %p148
        %p308 = pneg %p177
        %p309 = pneg %p174
        %s310 = sand.u32 %s164, 1
        %s311 = scalar_lea.sflag [#allocation4], %s310
        %s312 = sand.u32 %s164, 1
        %s313 = smul.addr %s312, 128
        %s314 = scalar_lea.vmem [#allocation10], %s313
        %s315 = smul.u32 16, %s25
        %s316 = smul.u32 16, %s25
        %v317 = vld [vmem:[%s274] sm:$0xff]
        %v318 = vld [vmem:[%s274 + $0x8] sm:$0xff]
        %v319 = vld [vmem:[%s274 + $0x10] sm:$0xff]
        %v320 = vld [vmem:[%s274 + $0x18] sm:$0xff]
        %v321 = vld [vmem:[%s274 + $0x20] sm:$0xff]
        %v322 = vld [vmem:[%s274 + $0x28] sm:$0xff]
        %v323 = vld [vmem:[%s274 + $0x30] sm:$0xff]
        %v324 = vld [vmem:[%s274 + $0x38] sm:$0xff]
        %v325 = vld [vmem:[%s274 + $0x40] sm:$0xff]
        %v326 = vld [vmem:[%s274 + $0x48] sm:$0xff]
        %v327 = vld [vmem:[%s274 + $0x50] sm:$0xff]
        %v328 = vld [vmem:[%s274 + $0x58] sm:$0xff]
        %v329 = vld [vmem:[%s274 + $0x60] sm:$0xff]
        %v330 = vld [vmem:[%s274 + $0x68] sm:$0xff]
        %v331 = vld [vmem:[%s274 + $0x70] sm:$0xff]
        %v332 = vld [vmem:[%s274 + $0x78] sm:$0xff]
        %v333 = vld [vmem:[%s274 + $0x80] sm:$0xff]
        %v334 = vld [vmem:[%s274 + $0x88] sm:$0xff]
        %v335 = vld [vmem:[%s274 + $0x90] sm:$0xff]
        %v336 = vld [vmem:[%s274 + $0x98] sm:$0xff]
        %v337 = vld [vmem:[%s274 + $0xa0] sm:$0xff]
        %v338 = vld [vmem:[%s274 + $0xa8] sm:$0xff]
        %v339 = vld [vmem:[%s274 + $0xb0] sm:$0xff]
        %v340 = vld [vmem:[%s274 + $0xb8] sm:$0xff]
        %v341 = vld [vmem:[%s274 + $0xc0] sm:$0xff]
        %v342 = vld [vmem:[%s274 + $0xc8] sm:$0xff]
        %v343 = vld [vmem:[%s274 + $0xd0] sm:$0xff]
        %v344 = vld [vmem:[%s274 + $0xd8] sm:$0xff]
        %v345 = vld [vmem:[%s274 + $0xe0] sm:$0xff]
        %v346 = vld [vmem:[%s274 + $0xe8] sm:$0xff]
        %v347 = vld [vmem:[%s274 + $0xf0] sm:$0xff]
        %v348 = vld [vmem:[%s274 + $0xf8] sm:$0xff]
        %v349 = vld [vmem:[%s274 + $0x100] sm:$0xff]
        %v350 = vld [vmem:[%s274 + $0x108] sm:$0xff]
        %v351 = vld [vmem:[%s274 + $0x110] sm:$0xff]
        %v352 = vld [vmem:[%s274 + $0x118] sm:$0xff]
        %v353 = vld [vmem:[%s274 + $0x120] sm:$0xff]
        %v354 = vld [vmem:[%s274 + $0x128] sm:$0xff]
        %v355 = vld [vmem:[%s274 + $0x130] sm:$0xff]
        %v356 = vld [vmem:[%s274 + $0x138] sm:$0xff]
        %v357 = vld [vmem:[%s274 + $0x140] sm:$0xff]
        %v358 = vld [vmem:[%s274 + $0x148] sm:$0xff]
        %v359 = vld [vmem:[%s274 + $0x150] sm:$0xff]
        %v360 = vld [vmem:[%s274 + $0x158] sm:$0xff]
        %v361 = vld [vmem:[%s274 + $0x160] sm:$0xff]
        %v362 = vld [vmem:[%s274 + $0x168] sm:$0xff]
        %v363 = vld [vmem:[%s274 + $0x170] sm:$0xff]
        %v364 = vld [vmem:[%s274 + $0x178] sm:$0xff]
        %v365 = vld [vmem:[%s274 + $0x180] sm:$0xff]
        %v366 = vld [vmem:[%s274 + $0x188] sm:$0xff]
        %v367 = vld [vmem:[%s274 + $0x190] sm:$0xff]
        %v368 = vld [vmem:[%s274 + $0x198] sm:$0xff]
        %v369 = vld [vmem:[%s274 + $0x1a0] sm:$0xff]
        %v370 = vld [vmem:[%s274 + $0x1a8] sm:$0xff]
        %v371 = vld [vmem:[%s274 + $0x1b0] sm:$0xff]
        %v372 = vld [vmem:[%s274 + $0x1b8] sm:$0xff]
        %v373 = vld [vmem:[%s274 + $0x1c0] sm:$0xff]
        %v374 = vld [vmem:[%s274 + $0x1c8] sm:$0xff]
        %v375 = vld [vmem:[%s274 + $0x1d0] sm:$0xff]
        %v376 = vld [vmem:[%s274 + $0x1d8] sm:$0xff]
        %v377 = vld [vmem:[%s274 + $0x1e0] sm:$0xff]
        %v378 = vld [vmem:[%s274 + $0x1e8] sm:$0xff]
        %v379 = vld [vmem:[%s274 + $0x1f0] sm:$0xff]
        %v380 = vld [vmem:[%s274 + $0x1f8] sm:$0xff]
        %v381 = vld [vmem:[#allocation5] sm:$0xff]
        %v382 = vld [vmem:[#allocation5 + $0x8] sm:$0xff]
        %v383 = vld [vmem:[#allocation5 + $0x10] sm:$0xff]
        %v384 = vld [vmem:[#allocation5 + $0x18] sm:$0xff]
        %v385 = vld [vmem:[#allocation5 + $0x20] sm:$0xff]
        %v386 = vld [vmem:[#allocation5 + $0x28] sm:$0xff]
        %v387 = vld [vmem:[#allocation5 + $0x30] sm:$0xff]
        %v388 = vld [vmem:[#allocation5 + $0x38] sm:$0xff]
        %v389 = vld [vmem:[#allocation5 + $0x40] sm:$0xff]
        %v390 = vld [vmem:[#allocation5 + $0x48] sm:$0xff]
        %v391 = vld [vmem:[#allocation5 + $0x50] sm:$0xff]
        %v392 = vld [vmem:[#allocation5 + $0x58] sm:$0xff]
        %v393 = vld [vmem:[#allocation5 + $0x60] sm:$0xff]
        %v394 = vld [vmem:[#allocation5 + $0x68] sm:$0xff]
        %v395 = vld [vmem:[#allocation5 + $0x70] sm:$0xff]
        %v396 = vld [vmem:[#allocation5 + $0x78] sm:$0xff]
        %v397 = vld [vmem:[#allocation5 + $0x80] sm:$0xff]
        %v398 = vld [vmem:[#allocation5 + $0x88] sm:$0xff]
        %v399 = vld [vmem:[#allocation5 + $0x90] sm:$0xff]
        %v400 = vld [vmem:[#allocation5 + $0x98] sm:$0xff]
        %v401 = vld [vmem:[#allocation5 + $0xa0] sm:$0xff]
        %v402 = vld [vmem:[#allocation5 + $0xa8] sm:$0xff]
        %v403 = vld [vmem:[#allocation5 + $0xb0] sm:$0xff]
        %v404 = vld [vmem:[#allocation5 + $0xb8] sm:$0xff]
        %v405 = vld [vmem:[#allocation5 + $0xc0] sm:$0xff]
        %v406 = vld [vmem:[#allocation5 + $0xc8] sm:$0xff]
        %v407 = vld [vmem:[#allocation5 + $0xd0] sm:$0xff]
        %v408 = vld [vmem:[#allocation5 + $0xd8] sm:$0xff]
        %v409 = vld [vmem:[#allocation5 + $0xe0] sm:$0xff]
        %v410 = vld [vmem:[#allocation5 + $0xe8] sm:$0xff]
        %v411 = vld [vmem:[#allocation5 + $0xf0] sm:$0xff]
        %v412 = vld [vmem:[#allocation5 + $0xf8] sm:$0xff]
        %v413 = vld [vmem:[#allocation5 + $0x100] sm:$0xff]
        %v414 = vld [vmem:[#allocation5 + $0x108] sm:$0xff]
        %v415 = vld [vmem:[#allocation5 + $0x110] sm:$0xff]
        %v416 = vld [vmem:[#allocation5 + $0x118] sm:$0xff]
        %v417 = vld [vmem:[#allocation5 + $0x120] sm:$0xff]
        %v418 = vld [vmem:[#allocation5 + $0x128] sm:$0xff]
        %v419 = vld [vmem:[#allocation5 + $0x130] sm:$0xff]
        %v420 = vld [vmem:[#allocation5 + $0x138] sm:$0xff]
        %v421 = vld [vmem:[#allocation5 + $0x140] sm:$0xff]
        %v422 = vld [vmem:[#allocation5 + $0x148] sm:$0xff]
        %v423 = vld [vmem:[#allocation5 + $0x150] sm:$0xff]
        %v424 = vld [vmem:[#allocation5 + $0x158] sm:$0xff]
        %v425 = vld [vmem:[#allocation5 + $0x160] sm:$0xff]
        %v426 = vld [vmem:[#allocation5 + $0x168] sm:$0xff]
        %v427 = vld [vmem:[#allocation5 + $0x170] sm:$0xff]
        %v428 = vld [vmem:[#allocation5 + $0x178] sm:$0xff]
        %v429 = vld [vmem:[#allocation5 + $0x180] sm:$0xff]
        %v430 = vld [vmem:[#allocation5 + $0x188] sm:$0xff]
        %v431 = vld [vmem:[#allocation5 + $0x190] sm:$0xff]
        %v432 = vld [vmem:[#allocation5 + $0x198] sm:$0xff]
        %v433 = vld [vmem:[#allocation5 + $0x1a0] sm:$0xff]
        %v434 = vld [vmem:[#allocation5 + $0x1a8] sm:$0xff]
        %v435 = vld [vmem:[#allocation5 + $0x1b0] sm:$0xff]
        %v436 = vld [vmem:[#allocation5 + $0x1b8] sm:$0xff]
        %v437 = vld [vmem:[#allocation5 + $0x1c0] sm:$0xff]
        %v438 = vld [vmem:[#allocation5 + $0x1c8] sm:$0xff]
        %v439 = vld [vmem:[#allocation5 + $0x1d0] sm:$0xff]
        %v440 = vld [vmem:[#allocation5 + $0x1d8] sm:$0xff]
        %v441 = vld [vmem:[#allocation5 + $0x1e0] sm:$0xff]
        %v442 = vld [vmem:[#allocation5 + $0x1e8] sm:$0xff]
        %v443 = vld [vmem:[#allocation5 + $0x1f0] sm:$0xff]
        %v444 = vld [vmem:[#allocation5 + $0x1f8] sm:$0xff]
        %v445 = vld [vmem:[#allocation5 + $0x200] sm:$0xff]
        %v446 = vld [vmem:[#allocation5 + $0x208] sm:$0xff]
        %v447 = vld [vmem:[#allocation5 + $0x210] sm:$0xff]
        %v448 = vld [vmem:[#allocation5 + $0x218] sm:$0xff]
        %v449 = vld [vmem:[#allocation5 + $0x220] sm:$0xff]
        %v450 = vld [vmem:[#allocation5 + $0x228] sm:$0xff]
        %v451 = vld [vmem:[#allocation5 + $0x230] sm:$0xff]
        %v452 = vld [vmem:[#allocation5 + $0x238] sm:$0xff]
        %v453 = vld [vmem:[#allocation5 + $0x240] sm:$0xff]
        %v454 = vld [vmem:[#allocation5 + $0x248] sm:$0xff]
        %v455 = vld [vmem:[#allocation5 + $0x250] sm:$0xff]
        %v456 = vld [vmem:[#allocation5 + $0x258] sm:$0xff]
        %v457 = vld [vmem:[#allocation5 + $0x260] sm:$0xff]
        %v458 = vld [vmem:[#allocation5 + $0x268] sm:$0xff]
        %v459 = vld [vmem:[#allocation5 + $0x270] sm:$0xff]
        %v460 = vld [vmem:[#allocation5 + $0x278] sm:$0xff]
        %v461 = vld [vmem:[#allocation5 + $0x280] sm:$0xff]
        %v462 = vld [vmem:[#allocation5 + $0x288] sm:$0xff]
        %v463 = vld [vmem:[#allocation5 + $0x290] sm:$0xff]
        %v464 = vld [vmem:[#allocation5 + $0x298] sm:$0xff]
        %v465 = vld [vmem:[#allocation5 + $0x2a0] sm:$0xff]
        %v466 = vld [vmem:[#allocation5 + $0x2a8] sm:$0xff]
        %v467 = vld [vmem:[#allocation5 + $0x2b0] sm:$0xff]
        %v468 = vld [vmem:[#allocation5 + $0x2b8] sm:$0xff]
        %v469 = vld [vmem:[#allocation5 + $0x2c0] sm:$0xff]
        %v470 = vld [vmem:[#allocation5 + $0x2c8] sm:$0xff]
        %v471 = vld [vmem:[#allocation5 + $0x2d0] sm:$0xff]
        %v472 = vld [vmem:[#allocation5 + $0x2d8] sm:$0xff]
        %v473 = vld [vmem:[#allocation5 + $0x2e0] sm:$0xff]
        %v474 = vld [vmem:[#allocation5 + $0x2e8] sm:$0xff]
        %v475 = vld [vmem:[#allocation5 + $0x2f0] sm:$0xff]
        %v476 = vld [vmem:[#allocation5 + $0x2f8] sm:$0xff]
        %v477 = vld [vmem:[#allocation5 + $0x300] sm:$0xff]
        %v478 = vld [vmem:[#allocation5 + $0x308] sm:$0xff]
        %v479 = vld [vmem:[#allocation5 + $0x310] sm:$0xff]
        %v480 = vld [vmem:[#allocation5 + $0x318] sm:$0xff]
        %v481 = vld [vmem:[#allocation5 + $0x320] sm:$0xff]
        %v482 = vld [vmem:[#allocation5 + $0x328] sm:$0xff]
        %v483 = vld [vmem:[#allocation5 + $0x330] sm:$0xff]
        %v484 = vld [vmem:[#allocation5 + $0x338] sm:$0xff]
        %v485 = vld [vmem:[#allocation5 + $0x340] sm:$0xff]
        %v486 = vld [vmem:[#allocation5 + $0x348] sm:$0xff]
        %v487 = vld [vmem:[#allocation5 + $0x350] sm:$0xff]
        %v488 = vld [vmem:[#allocation5 + $0x358] sm:$0xff]
        %v489 = vld [vmem:[#allocation5 + $0x360] sm:$0xff]
        %v490 = vld [vmem:[#allocation5 + $0x368] sm:$0xff]
        %v491 = vld [vmem:[#allocation5 + $0x370] sm:$0xff]
        %v492 = vld [vmem:[#allocation5 + $0x378] sm:$0xff]
        %v493 = vld [vmem:[#allocation5 + $0x380] sm:$0xff]
        %v494 = vld [vmem:[#allocation5 + $0x388] sm:$0xff]
        %v495 = vld [vmem:[#allocation5 + $0x390] sm:$0xff]
        %v496 = vld [vmem:[#allocation5 + $0x398] sm:$0xff]
        %v497 = vld [vmem:[#allocation5 + $0x3a0] sm:$0xff]
        %v498 = vld [vmem:[#allocation5 + $0x3a8] sm:$0xff]
        %v499 = vld [vmem:[#allocation5 + $0x3b0] sm:$0xff]
        %v500 = vld [vmem:[#allocation5 + $0x3b8] sm:$0xff]
        %v501 = vld [vmem:[#allocation5 + $0x3c0] sm:$0xff]
        %v502 = vld [vmem:[#allocation5 + $0x3c8] sm:$0xff]
        %v503 = vld [vmem:[#allocation5 + $0x3d0] sm:$0xff]
        %v504 = vld [vmem:[#allocation5 + $0x3d8] sm:$0xff]
        %v505 = vld [vmem:[#allocation5 + $0x3e0] sm:$0xff]
        %v506 = vld [vmem:[#allocation5 + $0x3e8] sm:$0xff]
        %v507 = vld [vmem:[#allocation5 + $0x3f0] sm:$0xff]
        %v508 = vld [vmem:[#allocation5 + $0x3f8] sm:$0xff]
        %509 = vmatprep.subr.mxu0 %v382
        %510 = vmatpush1.msra.mxu0 %v381
        %511 = vmatprep.subr.mxu0 %v384
        %512 = vmatpush1.msra.mxu0 %v383
        %513 = vmatprep.subr.mxu0 %v386
        %514 = vmatpush1.msra.mxu0 %v385
        %515 = vmatprep.subr.mxu0 %v388
        %516 = vmatpush1.msra.mxu0 %v387
        %517 = vmatprep.subr.mxu0 %v390
        %518 = vmatpush1.msra.mxu0 %v389
        %519 = vmatprep.subr.mxu0 %v392
        %520 = vmatpush1.msra.mxu0 %v391
        %521 = vmatprep.subr.mxu0 %v394
        %522 = vmatpush1.msra.mxu0 %v393
        %523 = vmatprep.subr.mxu0 %v396
        %524 = vmatpush1.msra.mxu0 %v395
        %525 = vmatprep.subr.mxu0 %v398
        %526 = vmatpush1.msra.mxu0 %v397
        %527 = vmatprep.subr.mxu0 %v400
        %528 = vmatpush1.msra.mxu0 %v399
        %529 = vmatprep.subr.mxu0 %v402
        %530 = vmatpush1.msra.mxu0 %v401
        %531 = vmatprep.subr.mxu0 %v404
        %532 = vmatpush1.msra.mxu0 %v403
        %533 = vmatprep.subr.mxu0 %v406
        %534 = vmatpush1.msra.mxu0 %v405
        %535 = vmatprep.subr.mxu0 %v408
        %536 = vmatpush1.msra.mxu0 %v407
        %537 = vmatprep.subr.mxu0 %v410
        %538 = vmatpush1.msra.mxu0 %v409
        %539 = vmatprep.subr.mxu0 %v412
        %540 = vmatpush1.msra.mxu0 %v411
        %541 = vmatprep.subr.mxu0 %v414
        %542 = vmatpush1.msra.mxu0 %v413
        %543 = vmatprep.subr.mxu0 %v416
        %544 = vmatpush1.msra.mxu0 %v415
        %545 = vmatprep.subr.mxu0 %v418
        %546 = vmatpush1.msra.mxu0 %v417
        %547 = vmatprep.subr.mxu0 %v420
        %548 = vmatpush1.msra.mxu0 %v419
        %549 = vmatprep.subr.mxu0 %v422
        %550 = vmatpush1.msra.mxu0 %v421
        %551 = vmatprep.subr.mxu0 %v424
        %552 = vmatpush1.msra.mxu0 %v423
        %553 = vmatprep.subr.mxu0 %v426
        %554 = vmatpush1.msra.mxu0 %v425
        %555 = vmatprep.subr.mxu0 %v428
        %556 = vmatpush1.msra.mxu0 %v427
        %557 = vmatprep.subr.mxu0 %v430
        %558 = vmatpush1.msra.mxu0 %v429
        %559 = vmatprep.subr.mxu0 %v432
        %560 = vmatpush1.msra.mxu0 %v431
        %561 = vmatprep.subr.mxu0 %v434
        %562 = vmatpush1.msra.mxu0 %v433
        %563 = vmatprep.subr.mxu0 %v436
        %564 = vmatpush1.msra.mxu0 %v435
        %565 = vmatprep.subr.mxu0 %v438
        %566 = vmatpush1.msra.mxu0 %v437
        %567 = vmatprep.subr.mxu0 %v440
        %568 = vmatpush1.msra.mxu0 %v439
        %569 = vmatprep.subr.mxu0 %v442
        %570 = vmatpush1.msra.mxu0 %v441
        %571 = vmatprep.subr.mxu0 %v444
        %572 = vmatpush1.msra.mxu0 %v443
        %573 = vmatprep.mubr.f32.mxu0 %v318
        %574 = vmatmul.mubr.f32.gmra.mrb[0].mxu0 %v317
        %v575 = vpop.f32.mrb[0].mxu0
        %v576 = vadd.f32 0.0, %v575
        %v577 = vpop.f32.mrb[0].mxu0
        %v578 = vadd.f32 0.0, %v577
        %579 = vmatprep.mubr.f32.mxu0 %v322
        %580 = vmatmul.mubr.f32.gmra.mrb[0].mxu0 %v321
        %v581 = vpop.f32.mrb[0].mxu0
        %v582 = vadd.f32 0.0, %v581
        %v583 = vpop.f32.mrb[0].mxu0
        %v584 = vadd.f32 0.0, %v583
        %585 = vmatprep.mubr.f32.mxu0 %v326
        %586 = vmatmul.mubr.f32.gmra.mrb[0].mxu0 %v325
        %v587 = vpop.f32.mrb[0].mxu0
        %v588 = vadd.f32 0.0, %v587
        %v589 = vpop.f32.mrb[0].mxu0
        %v590 = vadd.f32 0.0, %v589
        %591 = vmatprep.mubr.f32.mxu0 %v330
        %592 = vmatmul.mubr.f32.gmra.mrb[0].mxu0 %v329
        %v593 = vpop.f32.mrb[0].mxu0
        %v594 = vadd.f32 0.0, %v593
        %v595 = vpop.f32.mrb[0].mxu0
        %v596 = vadd.f32 0.0, %v595
        %597 = vmatprep.mubr.f32.mxu0 %v334
        %598 = vmatmul.mubr.f32.gmra.mrb[0].mxu0 %v333
        %v599 = vpop.f32.mrb[0].mxu0
        %v600 = vadd.f32 0.0, %v599
        %v601 = vpop.f32.mrb[0].mxu0
        %v602 = vadd.f32 0.0, %v601
        %603 = vmatprep.mubr.f32.mxu0 %v338
        %604 = vmatmul.mubr.f32.gmra.mrb[0].mxu0 %v337
        %v605 = vpop.f32.mrb[0].mxu0
        %v606 = vadd.f32 0.0, %v605
        %v607 = vpop.f32.mrb[0].mxu0
        %v608 = vadd.f32 0.0, %v607
        %609 = vmatprep.mubr.f32.mxu0 %v342
        %610 = vmatmul.mubr.f32.gmra.mrb[0].mxu0 %v341
        %v611 = vpop.f32.mrb[0].mxu0
        %v612 = vadd.f32 0.0, %v611
        %v613 = vpop.f32.mrb[0].mxu0
        %v614 = vadd.f32 0.0, %v613
        %615 = vmatprep.mubr.f32.mxu0 %v346
        %616 = vmatmul.mubr.f32.gmra.mrb[0].mxu0 %v345
        %v617 = vpop.f32.mrb[0].mxu0
        %v618 = vadd.f32 0.0, %v617
        %v619 = vpop.f32.mrb[0].mxu0
        %v620 = vadd.f32 0.0, %v619
        %621 = vmatprep.mubr.f32.mxu0 %v350
        %622 = vmatmul.mubr.f32.gmra.mrb[0].mxu0 %v349
        %v623 = vpop.f32.mrb[0].mxu0
        %v624 = vadd.f32 0.0, %v623
        %v625 = vpop.f32.mrb[0].mxu0
        %v626 = vadd.f32 0.0, %v625
        %627 = vmatprep.mubr.f32.mxu0 %v354
        %628 = vmatmul.mubr.f32.gmra.mrb[0].mxu0 %v353
        %v629 = vpop.f32.mrb[0].mxu0
        %v630 = vadd.f32 0.0, %v629
        %v631 = vpop.f32.mrb[0].mxu0
        %v632 = vadd.f32 0.0, %v631
        %633 = vmatprep.mubr.f32.mxu0 %v358
        %634 = vmatmul.mubr.f32.gmra.mrb[0].mxu0 %v357
        %v635 = vpop.f32.mrb[0].mxu0
        %v636 = vadd.f32 0.0, %v635
        %v637 = vpop.f32.mrb[0].mxu0
        %v638 = vadd.f32 0.0, %v637
        %639 = vmatprep.mubr.f32.mxu0 %v362
        %640 = vmatmul.mubr.f32.gmra.mrb[0].mxu0 %v361
        %v641 = vpop.f32.mrb[0].mxu0
        %v642 = vadd.f32 0.0, %v641
        %v643 = vpop.f32.mrb[0].mxu0
        %v644 = vadd.f32 0.0, %v643
        %645 = vmatprep.mubr.f32.mxu0 %v366
        %646 = vmatmul.mubr.f32.gmra.mrb[0].mxu0 %v365
        %v647 = vpop.f32.mrb[0].mxu0
        %v648 = vadd.f32 0.0, %v647
        %v649 = vpop.f32.mrb[0].mxu0
        %v650 = vadd.f32 0.0, %v649
        %651 = vmatprep.mubr.f32.mxu0 %v370
        %652 = vmatmul.mubr.f32.gmra.mrb[0].mxu0 %v369
        %v653 = vpop.f32.mrb[0].mxu0
        %v654 = vadd.f32 0.0, %v653
        %v655 = vpop.f32.mrb[0].mxu0
        %v656 = vadd.f32 0.0, %v655
        %657 = vmatprep.mubr.f32.mxu0 %v374
        %658 = vmatmul.mubr.f32.gmra.mrb[0].mxu0 %v373
        %v659 = vpop.f32.mrb[0].mxu0
        %v660 = vadd.f32 0.0, %v659
        %v661 = vpop.f32.mrb[0].mxu0
        %v662 = vadd.f32 0.0, %v661
        %663 = vmatprep.mubr.f32.mxu0 %v378
        %664 = vmatmul.mubr.f32.gmra.mrb[0].mxu0 %v377
        %v665 = vpop.f32.mrb[0].mxu0
        %v666 = vadd.f32 0.0, %v665
        %v667 = vpop.f32.mrb[0].mxu0
        %v668 = vadd.f32 0.0, %v667
        %669 = vdwg.mxu0
        %670 = vmatprep.subr.mxu0 %v446
        %671 = vmatpush1.msra.mxu0 %v445
        %672 = vmatprep.subr.mxu0 %v448
        %673 = vmatpush1.msra.mxu0 %v447
        %674 = vmatprep.subr.mxu0 %v450
        %675 = vmatpush1.msra.mxu0 %v449
        %676 = vmatprep.subr.mxu0 %v452
        %677 = vmatpush1.msra.mxu0 %v451
        %678 = vmatprep.subr.mxu0 %v454
        %679 = vmatpush1.msra.mxu0 %v453
        %680 = vmatprep.subr.mxu0 %v456
        %681 = vmatpush1.msra.mxu0 %v455
        %682 = vmatprep.subr.mxu0 %v458
        %683 = vmatpush1.msra.mxu0 %v457
        %684 = vmatprep.subr.mxu0 %v460
        %685 = vmatpush1.msra.mxu0 %v459
        %686 = vmatprep.subr.mxu0 %v462
        %687 = vmatpush1.msra.mxu0 %v461
        %688 = vmatprep.subr.mxu0 %v464
        %689 = vmatpush1.msra.mxu0 %v463
        %690 = vmatprep.subr.mxu0 %v466
        %691 = vmatpush1.msra.mxu0 %v465
        %692 = vmatprep.subr.mxu0 %v468
        %693 = vmatpush1.msra.mxu0 %v467
        %694 = vmatprep.subr.mxu0 %v470
        %695 = vmatpush1.msra.mxu0 %v469
        %696 = vmatprep.subr.mxu0 %v472
        %697 = vmatpush1.msra.mxu0 %v471
        %698 = vmatprep.subr.mxu0 %v474
        %699 = vmatpush1.msra.mxu0 %v473
        %700 = vmatprep.subr.mxu0 %v476
        %701 = vmatpush1.msra.mxu0 %v475
        %702 = vmatprep.subr.mxu0 %v478
        %703 = vmatpush1.msra.mxu0 %v477
        %704 = vmatprep.subr.mxu0 %v480
        %705 = vmatpush1.msra.mxu0 %v479
        %706 = vmatprep.subr.mxu0 %v482
        %707 = vmatpush1.msra.mxu0 %v481
        %708 = vmatprep.subr.mxu0 %v484
        %709 = vmatpush1.msra.mxu0 %v483
        %710 = vmatprep.subr.mxu0 %v486
        %711 = vmatpush1.msra.mxu0 %v485
        %712 = vmatprep.subr.mxu0 %v488
        %713 = vmatpush1.msra.mxu0 %v487
        %714 = vmatprep.subr.mxu0 %v490
        %715 = vmatpush1.msra.mxu0 %v489
        %716 = vmatprep.subr.mxu0 %v492
        %717 = vmatpush1.msra.mxu0 %v491
        %718 = vmatprep.subr.mxu0 %v494
        %719 = vmatpush1.msra.mxu0 %v493
        %720 = vmatprep.subr.mxu0 %v496
        %721 = vmatpush1.msra.mxu0 %v495
        %722 = vmatprep.subr.mxu0 %v498
        %723 = vmatpush1.msra.mxu0 %v497
        %724 = vmatprep.subr.mxu0 %v500
        %725 = vmatpush1.msra.mxu0 %v499
        %726 = vmatprep.subr.mxu0 %v502
        %727 = vmatpush1.msra.mxu0 %v501
        %728 = vmatprep.subr.mxu0 %v504
        %729 = vmatpush1.msra.mxu0 %v503
        %730 = vmatprep.subr.mxu0 %v506
        %731 = vmatpush1.msra.mxu0 %v505
        %732 = vmatprep.subr.mxu0 %v508
        %733 = vmatpush1.msra.mxu0 %v507
        %734 = vmatprep.mubr.f32.mxu0 %v320
        %735 = vmatmul.mubr.f32.gmra.mrb[0].mxu0 %v319
        %v736 = vpop.f32.mrb[0].mxu0
        %v737 = vadd.f32 %v576, %v736
        %v738 = vpop.f32.mrb[0].mxu0
        %v739 = vadd.f32 %v578, %v738
        %740 = vmatprep.mubr.f32.mxu0 %v324
        %741 = vmatmul.mubr.f32.gmra.mrb[0].mxu0 %v323
        %v742 = vpop.f32.mrb[0].mxu0
        %v743 = vadd.f32 %v582, %v742
        %v744 = vpop.f32.mrb[0].mxu0
        %v745 = vadd.f32 %v584, %v744
        %746 = vmatprep.mubr.f32.mxu0 %v328
        %747 = vmatmul.mubr.f32.gmra.mrb[0].mxu0 %v327
        %v748 = vpop.f32.mrb[0].mxu0
        %v749 = vadd.f32 %v588, %v748
        %v750 = vpop.f32.mrb[0].mxu0
        %v751 = vadd.f32 %v590, %v750
        %752 = vmatprep.mubr.f32.mxu0 %v332
        %753 = vmatmul.mubr.f32.gmra.mrb[0].mxu0 %v331
        %v754 = vpop.f32.mrb[0].mxu0
        %v755 = vadd.f32 %v594, %v754
        %v756 = vpop.f32.mrb[0].mxu0
        %v757 = vadd.f32 %v596, %v756
        %758 = vmatprep.mubr.f32.mxu0 %v336
        %759 = vmatmul.mubr.f32.gmra.mrb[0].mxu0 %v335
        %v760 = vpop.f32.mrb[0].mxu0
        %v761 = vadd.f32 %v600, %v760
        %v762 = vpop.f32.mrb[0].mxu0
        %v763 = vadd.f32 %v602, %v762
        %764 = vmatprep.mubr.f32.mxu0 %v340
        %765 = vmatmul.mubr.f32.gmra.mrb[0].mxu0 %v339
        %v766 = vpop.f32.mrb[0].mxu0
        %v767 = vadd.f32 %v606, %v766
        %v768 = vpop.f32.mrb[0].mxu0
        %v769 = vadd.f32 %v608, %v768
        %770 = vmatprep.mubr.f32.mxu0 %v344
        %771 = vmatmul.mubr.f32.gmra.mrb[0].mxu0 %v343
        %v772 = vpop.f32.mrb[0].mxu0
        %v773 = vadd.f32 %v612, %v772
        %v774 = vpop.f32.mrb[0].mxu0
        %v775 = vadd.f32 %v614, %v774
        %776 = vmatprep.mubr.f32.mxu0 %v348
        %777 = vmatmul.mubr.f32.gmra.mrb[0].mxu0 %v347
        %v778 = vpop.f32.mrb[0].mxu0
        %v779 = vadd.f32 %v618, %v778
        %v780 = vpop.f32.mrb[0].mxu0
        %v781 = vadd.f32 %v620, %v780
        %782 = vmatprep.mubr.f32.mxu0 %v352
        %783 = vmatmul.mubr.f32.gmra.mrb[0].mxu0 %v351
        %v784 = vpop.f32.mrb[0].mxu0
        %v785 = vadd.f32 %v624, %v784
        %v786 = vpop.f32.mrb[0].mxu0
        %v787 = vadd.f32 %v626, %v786
        %788 = vmatprep.mubr.f32.mxu0 %v356
        %789 = vmatmul.mubr.f32.gmra.mrb[0].mxu0 %v355
        %v790 = vpop.f32.mrb[0].mxu0
        %v791 = vadd.f32 %v630, %v790
        %v792 = vpop.f32.mrb[0].mxu0
        %v793 = vadd.f32 %v632, %v792
        %794 = vmatprep.mubr.f32.mxu0 %v360
        %795 = vmatmul.mubr.f32.gmra.mrb[0].mxu0 %v359
        %v796 = vpop.f32.mrb[0].mxu0
        %v797 = vadd.f32 %v636, %v796
        %v798 = vpop.f32.mrb[0].mxu0
        %v799 = vadd.f32 %v638, %v798
        %800 = vmatprep.mubr.f32.mxu0 %v364
        %801 = vmatmul.mubr.f32.gmra.mrb[0].mxu0 %v363
        %v802 = vpop.f32.mrb[0].mxu0
        %v803 = vadd.f32 %v642, %v802
        %v804 = vpop.f32.mrb[0].mxu0
        %v805 = vadd.f32 %v644, %v804
        %806 = vmatprep.mubr.f32.mxu0 %v368
        %807 = vmatmul.mubr.f32.gmra.mrb[0].mxu0 %v367
        %v808 = vpop.f32.mrb[0].mxu0
        %v809 = vadd.f32 %v648, %v808
        %v810 = vpop.f32.mrb[0].mxu0
        %v811 = vadd.f32 %v650, %v810
        %812 = vmatprep.mubr.f32.mxu0 %v372
        %813 = vmatmul.mubr.f32.gmra.mrb[0].mxu0 %v371
        %v814 = vpop.f32.mrb[0].mxu0
        %v815 = vadd.f32 %v654, %v814
        %v816 = vpop.f32.mrb[0].mxu0
        %v817 = vadd.f32 %v656, %v816
        %818 = vmatprep.mubr.f32.mxu0 %v376
        %819 = vmatmul.mubr.f32.gmra.mrb[0].mxu0 %v375
        %v820 = vpop.f32.mrb[0].mxu0
        %v821 = vadd.f32 %v660, %v820
        %v822 = vpop.f32.mrb[0].mxu0
        %v823 = vadd.f32 %v662, %v822
        %824 = vmatprep.mubr.f32.mxu0 %v380
        %825 = vmatmul.mubr.f32.gmra.mrb[0].mxu0 %v379
        %v826 = vpop.f32.mrb[0].mxu0
        %v827 = vadd.f32 %v666, %v826
        %v828 = vpop.f32.mrb[0].mxu0
        %v829 = vadd.f32 %v668, %v828
        %830 = vdwg.mxu0
        %v831 = vld [vmem:[#allocation7] sm:$0xff]
        %v832 = vld [vmem:[#allocation7 + $0x8] sm:$0xff]
        %v833 = vld [vmem:[#allocation7 + $0x10] sm:$0xff]
        %v834 = vld [vmem:[#allocation7 + $0x18] sm:$0xff]
        %v835 = vld [vmem:[#allocation7 + $0x20] sm:$0xff]
        %v836 = vld [vmem:[#allocation7 + $0x28] sm:$0xff]
        %v837 = vld [vmem:[#allocation7 + $0x30] sm:$0xff]
        %v838 = vld [vmem:[#allocation7 + $0x38] sm:$0xff]
        %v839 = vld [vmem:[#allocation7 + $0x40] sm:$0xff]
        %v840 = vld [vmem:[#allocation7 + $0x48] sm:$0xff]
        %v841 = vld [vmem:[#allocation7 + $0x50] sm:$0xff]
        %v842 = vld [vmem:[#allocation7 + $0x58] sm:$0xff]
        %v843 = vld [vmem:[#allocation7 + $0x60] sm:$0xff]
        %v844 = vld [vmem:[#allocation7 + $0x68] sm:$0xff]
        %v845 = vld [vmem:[#allocation7 + $0x70] sm:$0xff]
        %v846 = vld [vmem:[#allocation7 + $0x78] sm:$0xff]
        %v847 = vld [vmem:[#allocation7 + $0x80] sm:$0xff]
        %v848 = vld [vmem:[#allocation7 + $0x88] sm:$0xff]
        %v849 = vld [vmem:[#allocation7 + $0x90] sm:$0xff]
        %v850 = vld [vmem:[#allocation7 + $0x98] sm:$0xff]
        %v851 = vld [vmem:[#allocation7 + $0xa0] sm:$0xff]
        %v852 = vld [vmem:[#allocation7 + $0xa8] sm:$0xff]
        %v853 = vld [vmem:[#allocation7 + $0xb0] sm:$0xff]
        %v854 = vld [vmem:[#allocation7 + $0xb8] sm:$0xff]
        %v855 = vld [vmem:[#allocation7 + $0xc0] sm:$0xff]
        %v856 = vld [vmem:[#allocation7 + $0xc8] sm:$0xff]
        %v857 = vld [vmem:[#allocation7 + $0xd0] sm:$0xff]
        %v858 = vld [vmem:[#allocation7 + $0xd8] sm:$0xff]
        %v859 = vld [vmem:[#allocation7 + $0xe0] sm:$0xff]
        %v860 = vld [vmem:[#allocation7 + $0xe8] sm:$0xff]
        %v861 = vld [vmem:[#allocation7 + $0xf0] sm:$0xff]
        %v862 = vld [vmem:[#allocation7 + $0xf8] sm:$0xff]
        %v863 = vld [vmem:[%s3] sm:$0x1]
        %v865 = vlaneseq
        %v866 = vshrl.u32 %v865, 7
        %v867 = vsub.s32 0, %v866
        %v868 = vrot.slane %v863, %v867
        %870 = vmatprep.subr.mxu0 0.0
        %871 = vmatpush1.msra.mxu0 %v831
        %872 = vmatprep.subr.mxu0 0.0
        %873 = vmatpush1.msra.mxu0 %v832
        %874 = vmatprep.subr.mxu0 0.0
        %875 = vmatpush1.msra.mxu0 %v833
        %876 = vmatprep.subr.mxu0 0.0
        %877 = vmatpush1.msra.mxu0 %v834
        %878 = vmatprep.subr.mxu0 0.0
        %879 = vmatpush1.msra.mxu0 %v835
        %880 = vmatprep.subr.mxu0 0.0
        %881 = vmatpush1.msra.mxu0 %v836
        %882 = vmatprep.subr.mxu0 0.0
        %883 = vmatpush1.msra.mxu0 %v837
        %884 = vmatprep.subr.mxu0 0.0
        %885 = vmatpush1.msra.mxu0 %v838
        %886 = vmatprep.subr.mxu0 0.0
        %887 = vmatpush1.msra.mxu0 %v839
        %888 = vmatprep.subr.mxu0 0.0
        %889 = vmatpush1.msra.mxu0 %v840
        %890 = vmatprep.subr.mxu0 0.0
        %891 = vmatpush1.msra.mxu0 %v841
        %892 = vmatprep.subr.mxu0 0.0
        %893 = vmatpush1.msra.mxu0 %v842
        %894 = vmatprep.subr.mxu0 0.0
        %895 = vmatpush1.msra.mxu0 %v843
        %896 = vmatprep.subr.mxu0 0.0
        %897 = vmatpush1.msra.mxu0 %v844
        %898 = vmatprep.subr.mxu0 0.0
        %899 = vmatpush1.msra.mxu0 %v845
        %900 = vmatprep.subr.mxu0 0.0
        %901 = vmatpush1.msra.mxu0 %v846
        %902 = vmatprep.subr.mxu0 0.0
        %903 = vmatpush1.msra.mxu0 %v847
        %904 = vmatprep.subr.mxu0 0.0
        %905 = vmatpush1.msra.mxu0 %v848
        %906 = vmatprep.subr.mxu0 0.0
        %907 = vmatpush1.msra.mxu0 %v849
        %908 = vmatprep.subr.mxu0 0.0
        %909 = vmatpush1.msra.mxu0 %v850
        %910 = vmatprep.subr.mxu0 0.0
        %911 = vmatpush1.msra.mxu0 %v851
        %912 = vmatprep.subr.mxu0 0.0
        %913 = vmatpush1.msra.mxu0 %v852
        %914 = vmatprep.subr.mxu0 0.0
        %915 = vmatpush1.msra.mxu0 %v853
        %916 = vmatprep.subr.mxu0 0.0
        %917 = vmatpush1.msra.mxu0 %v854
        %918 = vmatprep.subr.mxu0 0.0
        %919 = vmatpush1.msra.mxu0 %v855
        %920 = vmatprep.subr.mxu0 0.0
        %921 = vmatpush1.msra.mxu0 %v856
        %922 = vmatprep.subr.mxu0 0.0
        %923 = vmatpush1.msra.mxu0 %v857
        %924 = vmatprep.subr.mxu0 0.0
        %925 = vmatpush1.msra.mxu0 %v858
        %926 = vmatprep.subr.mxu0 0.0
        %927 = vmatpush1.msra.mxu0 %v859
        %928 = vmatprep.subr.mxu0 0.0
        %929 = vmatpush1.msra.mxu0 %v860
        %930 = vmatprep.subr.mxu0 0.0
        %931 = vmatpush1.msra.mxu0 %v861
        %932 = vmatprep.subr.mxu0 0.0
        %933 = vmatpush1.msra.mxu0 %v862
        %934 = vmatprep.mubr.f32.mxu0 %v739
        %935 = vmatmul.mubr.f32.gmra.mrb[0].mxu0 %v737
        %v936 = vpop.f32.mrb[0].mxu0
        %v937 = vadd.f32 %v868, %v936
        %v938 = vpop.f32.mrb[0].mxu0
        %939 = vmatprep.mubr.f32.mxu0 %v745
        %940 = vmatmul.mubr.f32.gmra.mrb[0].mxu0 %v743
        %v941 = vpop.f32.mrb[0].mxu0
        %v942 = vadd.f32 %v868, %v941
        %v943 = vpop.f32.mrb[0].mxu0
        %944 = vmatprep.mubr.f32.mxu0 %v751
        %945 = vmatmul.mubr.f32.gmra.mrb[0].mxu0 %v749
        %v946 = vpop.f32.mrb[0].mxu0
        %v947 = vadd.f32 %v868, %v946
        %v948 = vpop.f32.mrb[0].mxu0
        %949 = vmatprep.mubr.f32.mxu0 %v757
        %950 = vmatmul.mubr.f32.gmra.mrb[0].mxu0 %v755
        %v951 = vpop.f32.mrb[0].mxu0
        %v952 = vadd.f32 %v868, %v951
        %v953 = vpop.f32.mrb[0].mxu0
        %954 = vmatprep.mubr.f32.mxu0 %v763
        %955 = vmatmul.mubr.f32.gmra.mrb[0].mxu0 %v761
        %v956 = vpop.f32.mrb[0].mxu0
        %v957 = vadd.f32 %v868, %v956
        %v958 = vpop.f32.mrb[0].mxu0
        %959 = vmatprep.mubr.f32.mxu0 %v769
        %960 = vmatmul.mubr.f32.gmra.mrb[0].mxu0 %v767
        %v961 = vpop.f32.mrb[0].mxu0
        %v962 = vadd.f32 %v868, %v961
        %v963 = vpop.f32.mrb[0].mxu0
        %964 = vmatprep.mubr.f32.mxu0 %v775
        %965 = vmatmul.mubr.f32.gmra.mrb[0].mxu0 %v773
        %v966 = vpop.f32.mrb[0].mxu0
        %v967 = vadd.f32 %v868, %v966
        %v968 = vpop.f32.mrb[0].mxu0
        %969 = vmatprep.mubr.f32.mxu0 %v781
        %970 = vmatmul.mubr.f32.gmra.mrb[0].mxu0 %v779
        %v971 = vpop.f32.mrb[0].mxu0
        %v972 = vadd.f32 %v868, %v971
        %v973 = vpop.f32.mrb[0].mxu0
        %974 = vmatprep.mubr.f32.mxu0 %v787
        %975 = vmatmul.mubr.f32.gmra.mrb[0].mxu0 %v785
        %v976 = vpop.f32.mrb[0].mxu0
        %v977 = vadd.f32 %v868, %v976
        %v978 = vpop.f32.mrb[0].mxu0
        %979 = vmatprep.mubr.f32.mxu0 %v793
        %980 = vmatmul.mubr.f32.gmra.mrb[0].mxu0 %v791
        %v981 = vpop.f32.mrb[0].mxu0
        %v982 = vadd.f32 %v868, %v981
        %v983 = vpop.f32.mrb[0].mxu0
        %984 = vmatprep.mubr.f32.mxu0 %v799
        %985 = vmatmul.mubr.f32.gmra.mrb[0].mxu0 %v797
        %v986 = vpop.f32.mrb[0].mxu0
        %v987 = vadd.f32 %v868, %v986
        %v988 = vpop.f32.mrb[0].mxu0
        %989 = vmatprep.mubr.f32.mxu0 %v805
        %990 = vmatmul.mubr.f32.gmra.mrb[0].mxu0 %v803
        %v991 = vpop.f32.mrb[0].mxu0
        %v992 = vadd.f32 %v868, %v991
        %v993 = vpop.f32.mrb[0].mxu0
        %994 = vmatprep.mubr.f32.mxu0 %v811
        %995 = vmatmul.mubr.f32.gmra.mrb[0].mxu0 %v809
        %v996 = vpop.f32.mrb[0].mxu0
        %v997 = vadd.f32 %v868, %v996
        %v998 = vpop.f32.mrb[0].mxu0
        %999 = vmatprep.mubr.f32.mxu0 %v817
        %1000 = vmatmul.mubr.f32.gmra.mrb[0].mxu0 %v815
        %v1001 = vpop.f32.mrb[0].mxu0
        %v1002 = vadd.f32 %v868, %v1001
        %v1003 = vpop.f32.mrb[0].mxu0
        %1004 = vmatprep.mubr.f32.mxu0 %v823
        %1005 = vmatmul.mubr.f32.gmra.mrb[0].mxu0 %v821
        %v1006 = vpop.f32.mrb[0].mxu0
        %v1007 = vadd.f32 %v868, %v1006
        %v1008 = vpop.f32.mrb[0].mxu0
        %1009 = vmatprep.mubr.f32.mxu0 %v829
        %1010 = vmatmul.mubr.f32.gmra.mrb[0].mxu0 %v827
        %v1011 = vpop.f32.mrb[0].mxu0
        %v1012 = vadd.f32 %v868, %v1011
        %v1013 = vpop.f32.mrb[0].mxu0
        %1014 = vdwg.mxu0
        %v1015 = vmax.f32 %v937, 0.0
        %v1016 = vmax.f32 %v942, 0.0
        %v1017 = vmax.f32 %v947, 0.0
        %v1018 = vmax.f32 %v952, 0.0
        %v1019 = vmax.f32 %v957, 0.0
        %v1020 = vmax.f32 %v962, 0.0
        %v1021 = vmax.f32 %v967, 0.0
        %v1022 = vmax.f32 %v972, 0.0
        %v1023 = vmax.f32 %v977, 0.0
        %v1024 = vmax.f32 %v982, 0.0
        %v1025 = vmax.f32 %v987, 0.0
        %v1026 = vmax.f32 %v992, 0.0
        %v1027 = vmax.f32 %v997, 0.0
        %v1028 = vmax.f32 %v1002, 0.0
        %v1029 = vmax.f32 %v1007, 0.0
        %v1030 = vmax.f32 %v1012, 0.0
        %v1031 = vld [vmem:[#allocation8] sm:$0xff]
        %v1032 = vld [vmem:[#allocation8 + $0x8] sm:$0xff]
        %v1033 = vld [vmem:[#allocation8 + $0x10] sm:$0xff]
        %v1034 = vld [vmem:[#allocation8 + $0x18] sm:$0xff]
        %v1035 = vld [vmem:[#allocation8 + $0x20] sm:$0xff]
        %v1036 = vld [vmem:[#allocation8 + $0x28] sm:$0xff]
        %v1037 = vld [vmem:[#allocation8 + $0x30] sm:$0xff]
        %v1038 = vld [vmem:[#allocation8 + $0x38] sm:$0xff]
        %v1039 = vld [vmem:[#allocation8 + $0x40] sm:$0xff]
        %v1040 = vld [vmem:[#allocation8 + $0x48] sm:$0xff]
        %v1041 = vld [vmem:[#allocation8 + $0x50] sm:$0xff]
        %v1042 = vld [vmem:[#allocation8 + $0x58] sm:$0xff]
        %v1043 = vld [vmem:[#allocation8 + $0x60] sm:$0xff]
        %v1044 = vld [vmem:[#allocation8 + $0x68] sm:$0xff]
        %v1045 = vld [vmem:[#allocation8 + $0x70] sm:$0xff]
        %v1046 = vld [vmem:[#allocation8 + $0x78] sm:$0xff]
        %v1047 = vld [vmem:[%s5] sm:$0x1]
        %v1049 = vlaneseq
        %v1050 = vshrl.u32 %v1049, 7
        %v1051 = vsub.s32 0, %v1050
        %v1052 = vrot.slane %v1047, %v1051
        %1054 = vmatprep.subr.mxu0 0.0
        %1055 = vmatpush1.msra.mxu0 %v1031
        %1056 = vmatprep.subr.mxu0 0.0
        %1057 = vmatpush1.msra.mxu0 %v1032
        %1058 = vmatprep.subr.mxu0 0.0
        %1059 = vmatpush1.msra.mxu0 %v1033
        %1060 = vmatprep.subr.mxu0 0.0
        %1061 = vmatpush1.msra.mxu0 %v1034
        %1062 = vmatprep.subr.mxu0 0.0
        %1063 = vmatpush1.msra.mxu0 %v1035
        %1064 = vmatprep.subr.mxu0 0.0
        %1065 = vmatpush1.msra.mxu0 %v1036
        %1066 = vmatprep.subr.mxu0 0.0
        %1067 = vmatpush1.msra.mxu0 %v1037
        %1068 = vmatprep.subr.mxu0 0.0
        %1069 = vmatpush1.msra.mxu0 %v1038
        %1070 = vmatprep.subr.mxu0 0.0
        %1071 = vmatpush1.msra.mxu0 %v1039
        %1072 = vmatprep.subr.mxu0 0.0
        %1073 = vmatpush1.msra.mxu0 %v1040
        %1074 = vmatprep.subr.mxu0 0.0
        %1075 = vmatpush1.msra.mxu0 %v1041
        %1076 = vmatprep.subr.mxu0 0.0
        %1077 = vmatpush1.msra.mxu0 %v1042
        %1078 = vmatprep.subr.mxu0 0.0
        %1079 = vmatpush1.msra.mxu0 %v1043
        %1080 = vmatprep.subr.mxu0 0.0
        %1081 = vmatpush1.msra.mxu0 %v1044
        %1082 = vmatprep.subr.mxu0 0.0
        %1083 = vmatpush1.msra.mxu0 %v1045
        %1084 = vmatprep.subr.mxu0 0.0
        %1085 = vmatpush1.msra.mxu0 %v1046
        %1086 = vmatprep.subr.mxu0 0.0
        %1087 = vmatpush1.msra.mxu0 0.0
        %1088 = vmatprep.subr.mxu0 0.0
        %1089 = vmatpush1.msra.mxu0 0.0
        %1090 = vmatprep.subr.mxu0 0.0
        %1091 = vmatpush1.msra.mxu0 0.0
        %1092 = vmatprep.subr.mxu0 0.0
        %1093 = vmatpush1.msra.mxu0 0.0
        %1094 = vmatprep.subr.mxu0 0.0
        %1095 = vmatpush1.msra.mxu0 0.0
        %1096 = vmatprep.subr.mxu0 0.0
        %1097 = vmatpush1.msra.mxu0 0.0
        %1098 = vmatprep.subr.mxu0 0.0
        %1099 = vmatpush1.msra.mxu0 0.0
        %1100 = vmatprep.subr.mxu0 0.0
        %1101 = vmatpush1.msra.mxu0 0.0
        %1102 = vmatprep.subr.mxu0 0.0
        %1103 = vmatpush1.msra.mxu0 0.0
        %1104 = vmatprep.subr.mxu0 0.0
        %1105 = vmatpush1.msra.mxu0 0.0
        %1106 = vmatprep.subr.mxu0 0.0
        %1107 = vmatpush1.msra.mxu0 0.0
        %1108 = vmatprep.subr.mxu0 0.0
        %1109 = vmatpush1.msra.mxu0 0.0
        %1110 = vmatprep.subr.mxu0 0.0
        %1111 = vmatpush1.msra.mxu0 0.0
        %1112 = vmatprep.subr.mxu0 0.0
        %1113 = vmatpush1.msra.mxu0 0.0
        %1114 = vmatprep.subr.mxu0 0.0
        %1115 = vmatpush1.msra.mxu0 0.0
        %1116 = vmatprep.subr.mxu0 0.0
        %1117 = vmatpush1.msra.mxu0 0.0
        %1118 = vmatprep.mubr.f32.mxu0 0.0
        %1119 = vmatmul.mubr.f32.gmra.mrb[0].mxu0 %v1015
        %v1120 = vpop.f32.mrb[0].mxu0
        %v1121 = vadd.f32 %v1052, %v1120
        %v1122 = vpop.f32.mrb[0].mxu0
        %1123 = vmatprep.mubr.f32.mxu0 0.0
        %1124 = vmatmul.mubr.f32.gmra.mrb[0].mxu0 %v1016
        %v1125 = vpop.f32.mrb[0].mxu0
        %v1126 = vadd.f32 %v1052, %v1125
        %v1127 = vpop.f32.mrb[0].mxu0
        %1128 = vmatprep.mubr.f32.mxu0 0.0
        %1129 = vmatmul.mubr.f32.gmra.mrb[0].mxu0 %v1017
        %v1130 = vpop.f32.mrb[0].mxu0
        %v1131 = vadd.f32 %v1052, %v1130
        %v1132 = vpop.f32.mrb[0].mxu0
        %1133 = vmatprep.mubr.f32.mxu0 0.0
        %1134 = vmatmul.mubr.f32.gmra.mrb[0].mxu0 %v1018
        %v1135 = vpop.f32.mrb[0].mxu0
        %v1136 = vadd.f32 %v1052, %v1135
        %v1137 = vpop.f32.mrb[0].mxu0
        %1138 = vmatprep.mubr.f32.mxu0 0.0
        %1139 = vmatmul.mubr.f32.gmra.mrb[0].mxu0 %v1019
        %v1140 = vpop.f32.mrb[0].mxu0
        %v1141 = vadd.f32 %v1052, %v1140
        %v1142 = vpop.f32.mrb[0].mxu0
        %1143 = vmatprep.mubr.f32.mxu0 0.0
        %1144 = vmatmul.mubr.f32.gmra.mrb[0].mxu0 %v1020
        %v1145 = vpop.f32.mrb[0].mxu0
        %v1146 = vadd.f32 %v1052, %v1145
        %v1147 = vpop.f32.mrb[0].mxu0
        %1148 = vmatprep.mubr.f32.mxu0 0.0
        %1149 = vmatmul.mubr.f32.gmra.mrb[0].mxu0 %v1021
        %v1150 = vpop.f32.mrb[0].mxu0
        %v1151 = vadd.f32 %v1052, %v1150
        %v1152 = vpop.f32.mrb[0].mxu0
        %1153 = vmatprep.mubr.f32.mxu0 0.0
        %1154 = vmatmul.mubr.f32.gmra.mrb[0].mxu0 %v1022
        %v1155 = vpop.f32.mrb[0].mxu0
        %v1156 = vadd.f32 %v1052, %v1155
        %v1157 = vpop.f32.mrb[0].mxu0
        %1158 = vmatprep.mubr.f32.mxu0 0.0
        %1159 = vmatmul.mubr.f32.gmra.mrb[0].mxu0 %v1023
        %v1160 = vpop.f32.mrb[0].mxu0
        %v1161 = vadd.f32 %v1052, %v1160
        %v1162 = vpop.f32.mrb[0].mxu0
        %1163 = vmatprep.mubr.f32.mxu0 0.0
        %1164 = vmatmul.mubr.f32.gmra.mrb[0].mxu0 %v1024
        %v1165 = vpop.f32.mrb[0].mxu0
        %v1166 = vadd.f32 %v1052, %v1165
        %v1167 = vpop.f32.mrb[0].mxu0
        %1168 = vmatprep.mubr.f32.mxu0 0.0
        %1169 = vmatmul.mubr.f32.gmra.mrb[0].mxu0 %v1025
        %v1170 = vpop.f32.mrb[0].mxu0
        %v1171 = vadd.f32 %v1052, %v1170
        %v1172 = vpop.f32.mrb[0].mxu0
        %1173 = vmatprep.mubr.f32.mxu0 0.0
        %1174 = vmatmul.mubr.f32.gmra.mrb[0].mxu0 %v1026
        %v1175 = vpop.f32.mrb[0].mxu0
        %v1176 = vadd.f32 %v1052, %v1175
        %v1177 = vpop.f32.mrb[0].mxu0
        %1178 = vmatprep.mubr.f32.mxu0 0.0
        %1179 = vmatmul.mubr.f32.gmra.mrb[0].mxu0 %v1027
        %v1180 = vpop.f32.mrb[0].mxu0
        %v1181 = vadd.f32 %v1052, %v1180
        %v1182 = vpop.f32.mrb[0].mxu0
        %1183 = vmatprep.mubr.f32.mxu0 0.0
        %1184 = vmatmul.mubr.f32.gmra.mrb[0].mxu0 %v1028
        %v1185 = vpop.f32.mrb[0].mxu0
        %v1186 = vadd.f32 %v1052, %v1185
        %v1187 = vpop.f32.mrb[0].mxu0
        %1188 = vmatprep.mubr.f32.mxu0 0.0
        %1189 = vmatmul.mubr.f32.gmra.mrb[0].mxu0 %v1029
        %v1190 = vpop.f32.mrb[0].mxu0
        %v1191 = vadd.f32 %v1052, %v1190
        %v1192 = vpop.f32.mrb[0].mxu0
        %1193 = vmatprep.mubr.f32.mxu0 0.0
        %1194 = vmatmul.mubr.f32.gmra.mrb[0].mxu0 %v1030
        %v1195 = vpop.f32.mrb[0].mxu0
        %v1196 = vadd.f32 %v1052, %v1195
        %v1197 = vpop.f32.mrb[0].mxu0
        %1198 = vdwg.mxu0
        %1199 = vmax.xlane.f32.xlu0 %v1121
        %v1200 = vpop.xlane.xlu0 %1199
        %1201 = vmax.xlane.f32.xlu0 %v1126
        %v1202 = vpop.xlane.xlu0 %1201
        %1203 = vmax.xlane.f32.xlu0 %v1131
        %v1204 = vpop.xlane.xlu0 %1203
        %1205 = vmax.xlane.f32.xlu0 %v1136
        %v1206 = vpop.xlane.xlu0 %1205
        %1207 = vmax.xlane.f32.xlu0 %v1141
        %v1208 = vpop.xlane.xlu0 %1207
        %1209 = vmax.xlane.f32.xlu0 %v1146
        %v1210 = vpop.xlane.xlu0 %1209
        %1211 = vmax.xlane.f32.xlu0 %v1151
        %v1212 = vpop.xlane.xlu0 %1211
        %1213 = vmax.xlane.f32.xlu0 %v1156
        %v1214 = vpop.xlane.xlu0 %1213
        %1215 = vmax.xlane.f32.xlu0 %v1161
        %v1216 = vpop.xlane.xlu0 %1215
        %1217 = vmax.xlane.f32.xlu0 %v1166
        %v1218 = vpop.xlane.xlu0 %1217
        %1219 = vmax.xlane.f32.xlu0 %v1171
        %v1220 = vpop.xlane.xlu0 %1219
        %1221 = vmax.xlane.f32.xlu0 %v1176
        %v1222 = vpop.xlane.xlu0 %1221
        %1223 = vmax.xlane.f32.xlu0 %v1181
        %v1224 = vpop.xlane.xlu0 %1223
        %1225 = vmax.xlane.f32.xlu0 %v1186
        %v1226 = vpop.xlane.xlu0 %1225
        %1227 = vmax.xlane.f32.xlu0 %v1191
        %v1228 = vpop.xlane.xlu0 %1227
        %1229 = vmax.xlane.f32.xlu0 %v1196
        %v1230 = vpop.xlane.xlu0 %1229
        %v1231 = vsub.f32 %v1121, %v1200
        %v1232 = vsub.f32 %v1126, %v1202
        %v1233 = vsub.f32 %v1131, %v1204
        %v1234 = vsub.f32 %v1136, %v1206
        %v1235 = vsub.f32 %v1141, %v1208
        %v1236 = vsub.f32 %v1146, %v1210
        %v1237 = vsub.f32 %v1151, %v1212
        %v1238 = vsub.f32 %v1156, %v1214
        %v1239 = vsub.f32 %v1161, %v1216
        %v1240 = vsub.f32 %v1166, %v1218
        %v1241 = vsub.f32 %v1171, %v1220
        %v1242 = vsub.f32 %v1176, %v1222
        %v1243 = vsub.f32 %v1181, %v1224
        %v1244 = vsub.f32 %v1186, %v1226
        %v1245 = vsub.f32 %v1191, %v1228
        %v1246 = vsub.f32 %v1196, %v1230
        %v1247 = vmul.f32 %v1231, 1.442695
        %v1248 = vpow.pop %v1247
        %v1249 = vmul.f32 %v1232, 1.442695
        %v1250 = vpow.pop %v1249
        %v1251 = vmul.f32 %v1233, 1.442695
        %v1252 = vpow.pop %v1251
        %v1253 = vmul.f32 %v1234, 1.442695
        %v1254 = vpow.pop %v1253
        %v1255 = vmul.f32 %v1235, 1.442695
        %v1256 = vpow.pop %v1255
        %v1257 = vmul.f32 %v1236, 1.442695
        %v1258 = vpow.pop %v1257
        %v1259 = vmul.f32 %v1237, 1.442695
        %v1260 = vpow.pop %v1259
        %v1261 = vmul.f32 %v1238, 1.442695
        %v1262 = vpow.pop %v1261
        %v1263 = vmul.f32 %v1239, 1.442695
        %v1264 = vpow.pop %v1263
        %v1265 = vmul.f32 %v1240, 1.442695
        %v1266 = vpow.pop %v1265
        %v1267 = vmul.f32 %v1241, 1.442695
        %v1268 = vpow.pop %v1267
        %v1269 = vmul.f32 %v1242, 1.442695
        %v1270 = vpow.pop %v1269
        %v1271 = vmul.f32 %v1243, 1.442695
        %v1272 = vpow.pop %v1271
        %v1273 = vmul.f32 %v1244, 1.442695
        %v1274 = vpow.pop %v1273
        %v1275 = vmul.f32 %v1245, 1.442695
        %v1276 = vpow.pop %v1275
        %v1277 = vmul.f32 %v1246, 1.442695
        %v1278 = vpow.pop %v1277
        %1279 = vadd.xlane.f32.xlu0 %v1248
        %v1280 = vpop.xlane.xlu0 %1279
        %1281 = vadd.xlane.f32.xlu0 %v1250
        %v1282 = vpop.xlane.xlu0 %1281
        %1283 = vadd.xlane.f32.xlu0 %v1252
        %v1284 = vpop.xlane.xlu0 %1283
        %1285 = vadd.xlane.f32.xlu0 %v1254
        %v1286 = vpop.xlane.xlu0 %1285
        %1287 = vadd.xlane.f32.xlu0 %v1256
        %v1288 = vpop.xlane.xlu0 %1287
        %1289 = vadd.xlane.f32.xlu0 %v1258
        %v1290 = vpop.xlane.xlu0 %1289
        %1291 = vadd.xlane.f32.xlu0 %v1260
        %v1292 = vpop.xlane.xlu0 %1291
        %1293 = vadd.xlane.f32.xlu0 %v1262
        %v1294 = vpop.xlane.xlu0 %1293
        %1295 = vadd.xlane.f32.xlu0 %v1264
        %v1296 = vpop.xlane.xlu0 %1295
        %1297 = vadd.xlane.f32.xlu0 %v1266
        %v1298 = vpop.xlane.xlu0 %1297
        %1299 = vadd.xlane.f32.xlu0 %v1268
        %v1300 = vpop.xlane.xlu0 %1299
        %1301 = vadd.xlane.f32.xlu0 %v1270
        %v1302 = vpop.xlane.xlu0 %1301
        %1303 = vadd.xlane.f32.xlu0 %v1272
        %v1304 = vpop.xlane.xlu0 %1303
        %1305 = vadd.xlane.f32.xlu0 %v1274
        %v1306 = vpop.xlane.xlu0 %1305
        %1307 = vadd.xlane.f32.xlu0 %v1276
        %v1308 = vpop.xlane.xlu0 %1307
        %1309 = vadd.xlane.f32.xlu0 %v1278
        %v1310 = vpop.xlane.xlu0 %1309
        %v1311 = vlog2.pop %v1280
        %v1312 = vmul.f32 %v1311, 0.6931472
        %v1313 = vlog2.pop %v1282
        %v1314 = vmul.f32 %v1313, 0.6931472
        %v1315 = vlog2.pop %v1284
        %v1316 = vmul.f32 %v1315, 0.6931472
        %v1317 = vlog2.pop %v1286
        %v1318 = vmul.f32 %v1317, 0.6931472
        %v1319 = vlog2.pop %v1288
        %v1320 = vmul.f32 %v1319, 0.6931472
        %v1321 = vlog2.pop %v1290
        %v1322 = vmul.f32 %v1321, 0.6931472
        %v1323 = vlog2.pop %v1292
        %v1324 = vmul.f32 %v1323, 0.6931472
        %v1325 = vlog2.pop %v1294
        %v1326 = vmul.f32 %v1325, 0.6931472
        %v1327 = vlog2.pop %v1296
        %v1328 = vmul.f32 %v1327, 0.6931472
        %v1329 = vlog2.pop %v1298
        %v1330 = vmul.f32 %v1329, 0.6931472
        %v1331 = vlog2.pop %v1300
        %v1332 = vmul.f32 %v1331, 0.6931472
        %v1333 = vlog2.pop %v1302
        %v1334 = vmul.f32 %v1333, 0.6931472
        %v1335 = vlog2.pop %v1304
        %v1336 = vmul.f32 %v1335, 0.6931472
        %v1337 = vlog2.pop %v1306
        %v1338 = vmul.f32 %v1337, 0.6931472
        %v1339 = vlog2.pop %v1308
        %v1340 = vmul.f32 %v1339, 0.6931472
        %v1341 = vlog2.pop %v1310
        %v1342 = vmul.f32 %v1341, 0.6931472
        %v1343 = vsub.f32 %v1231, %v1312
        %v1344 = vsub.f32 %v1232, %v1314
        %v1345 = vsub.f32 %v1233, %v1316
        %v1346 = vsub.f32 %v1234, %v1318
        %v1347 = vsub.f32 %v1235, %v1320
        %v1348 = vsub.f32 %v1236, %v1322
        %v1349 = vsub.f32 %v1237, %v1324
        %v1350 = vsub.f32 %v1238, %v1326
        %v1351 = vsub.f32 %v1239, %v1328
        %v1352 = vsub.f32 %v1240, %v1330
        %v1353 = vsub.f32 %v1241, %v1332
        %v1354 = vsub.f32 %v1242, %v1334
        %v1355 = vsub.f32 %v1243, %v1336
        %v1356 = vsub.f32 %v1244, %v1338
        %v1357 = vsub.f32 %v1245, %v1340
        %v1358 = vsub.f32 %v1246, %v1342
        %1359 = vst [vmem:[%s314] sm:$0xff] %v1343
        %1360 = vst [vmem:[%s314 + $0x8] sm:$0xff] %v1344
        %1361 = vst [vmem:[%s314 + $0x10] sm:$0xff] %v1345
        %1362 = vst [vmem:[%s314 + $0x18] sm:$0xff] %v1346
        %1363 = vst [vmem:[%s314 + $0x20] sm:$0xff] %v1347
        %1364 = vst [vmem:[%s314 + $0x28] sm:$0xff] %v1348
        %1365 = vst [vmem:[%s314 + $0x30] sm:$0xff] %v1349
        %1366 = vst [vmem:[%s314 + $0x38] sm:$0xff] %v1350
        %1367 = vst [vmem:[%s314 + $0x40] sm:$0xff] %v1351
        %1368 = vst [vmem:[%s314 + $0x48] sm:$0xff] %v1352
        %1369 = vst [vmem:[%s314 + $0x50] sm:$0xff] %v1353
        %1370 = vst [vmem:[%s314 + $0x58] sm:$0xff] %v1354
        %1371 = vst [vmem:[%s314 + $0x60] sm:$0xff] %v1355
        %1372 = vst [vmem:[%s314 + $0x68] sm:$0xff] %v1356
        %1373 = vst [vmem:[%s314 + $0x70] sm:$0xff] %v1357
        %1374 = vst [vmem:[%s314 + $0x78] sm:$0xff] %v1358
        %s1375 = sand.u32 %s164, 1
        %s1376 = scalar_lea.sflag [#allocation4], %s1375
        %s1377 = sand.u32 %s164, 1
        %s1378 = smul.addr %s1377, 128
        %s1379 = scalar_lea.vmem [#allocation10], %s1378
        // Predicated region
        $region61: #{tpu_custom_call.1} parent=43 // pred_check
          %p1380 = pneg %p174
        $region62: #{tpu_custom_call.1} parent=43 // pred_check_branch
          %1382 = sbr.rel (%p1380) target = $region64
        $region63: #{tpu_custom_call.1} parent=43 // pred_region
          %s1383 = smul.u32 16, %s25
          %s1385 = ssub.s32 2048, 2048
          %1386 = vsyncadd %s1376, %s1385
          %s1387 = smul.addr %s1383, 128
          %s1388 = scalar_lea.hbm %s6, %s1387
          %s1389 = sshll.u32 %s1379, 4
          %s1390 = int_to_ptr.vmem [resolvable:$true] %s1389
          %1395 = dma.vmem_to_hbm [thread:$0]  %s1390, 2048, %s1388, %s1376, 128, 128, 8
        $region64: #{tpu_custom_call.1} parent=43 // pred_fallthru
          _
      $region44: #{tpu_custom_call.1} parent=5 // pred_fallthru
        _
      %p1396 = scmp.le.s32.totalorder 2, %s20
      // Predicated region
      $region65: #{tpu_custom_call.1} parent=5 // pred_check
        %p1397 = pneg %p1396
      $region66: #{tpu_custom_call.1} parent=5 // pred_check_branch
        %1399 = sbr.rel (%p1397) target = $region68
      $region67: #{tpu_custom_call.1} parent=5 // pred_region
        %s1400 = ssub.s32 %s20, 2
        // Predicated region
        $region69: #{tpu_custom_call.1} parent=67 // pred_check
          %p1401 = pneg %p180
        $region70: #{tpu_custom_call.1} parent=67 // pred_check_branch
          %1403 = sbr.rel (%p1401) target = $region72
        $region71: #{tpu_custom_call.1} parent=67 // pred_region
          %s1404 = sand.u32 %s165, 1
          %s1405 = scalar_lea.sflag [#allocation4], %s1404
          %s1406 = sand.u32 %s165, 1
          %s1407 = smul.addr %s1406, 128
          %s1408 = scalar_lea.vmem [#allocation10], %s1407
          %1409 = dma.done %s1405, 2048
        $region72: #{tpu_custom_call.1} parent=67 // pred_fallthru
          _
      $region68: #{tpu_custom_call.1} parent=5 // pred_fallthru
        _
    $region6: #{tpu_custom_call.1} parent=1 // loop_footer
      %s24 = sadd.s32 1, %s20
    $region7: #{tpu_custom_call.1} parent=1 // loop_footer_branch
      %19 = sbr.rel target = $region3
    $region8: #{tpu_custom_call.1} parent=1 // loop_exit
      _
    %1410 = vsyncpa [#allocation3], 1
    %s1411 = scalar_lea.sflag [#allocation3], 1
    %1412 = vsyncpa %s1411, 1
    %1413 = vsyncpa [#allocation6], 1
    %1414 = vsyncpa [#allocation9], 1
    %1415 = vsyncpa [#allocation4], 1
    %s1416 = scalar_lea.sflag [#allocation4], 1
    %1417 = vsyncpa %s1416, 1

</llo_original>
